<compile_context>
chip_gen: v7x
topology: tpu7x:2x2x1
jax: 0.10.0
libtpu: 0.0.40
codegen_flags: <defaults>
</compile_context>

<pallas_src>
import jax
import jax.numpy as jnp
from jax.experimental import pallas as pl
from jax.experimental.pallas import tpu as pltpu

INPUT_DIM = 4
LATENT_DIM = 2
H1 = 128   # encoder layer 1 / decoder layer 2 width
H2 = 64    # encoder layer 2 / decoder layer 1 width
PACK_IN = 2 * INPUT_DIM + LATENT_DIM     # 10 = given | generated | eps
PACK_OUT = 2 * INPUT_DIM                 # 8  = recon | mu | logvar
MAX_TB = 512


def _cvae_kernel(
    inp_ref,
    w1_ref, b1_ref,
    w2_ref, b2_ref,
    whead_ref, bhead_ref,
    wd1z_ref, wd1g_ref, bd1_ref,
    wd2_ref, bd2_ref,
    wd3_ref, bd3_ref,
    out_ref,
):
    inp = inp_ref[...]                       # (TB, 10)
    x = inp[:, : 2 * INPUT_DIM]              # (TB, 8) encoder input
    g = inp[:, :INPUT_DIM]                   # (TB, 4) decoder conditioning
    eps = inp[:, 2 * INPUT_DIM:]             # (TB, 2) noise

    # ---- encoder ----
    h1 = jnp.dot(x, w1_ref[...], preferred_element_type=jnp.float32) + b1_ref[...]
    h1 = jnp.maximum(h1, 0.0)
    h2 = jnp.dot(h1, w2_ref[...], preferred_element_type=jnp.float32) + b2_ref[...]
    h2 = jnp.maximum(h2, 0.0)

    # fused mu/logvar head: (TB, 4) = [mu | logvar]
    head = jnp.dot(h2, whead_ref[...], preferred_element_type=jnp.float32) + bhead_ref[...]
    mu = head[:, :LATENT_DIM]
    logvar = head[:, LATENT_DIM:]

    # ---- reparameterize ----
    z = mu + eps * jnp.exp(0.5 * logvar)

    # ---- decoder ----
    # d1 = relu(cat([z, g]) @ Wd1 + bd1), realized with split weights.
    d1 = (
        jnp.dot(z, wd1z_ref[...], preferred_element_type=jnp.float32)
        + jnp.dot(g, wd1g_ref[...], preferred_element_type=jnp.float32)
        + bd1_ref[...]
    )
    d1 = jnp.maximum(d1, 0.0)
    d2 = jnp.dot(d1, wd2_ref[...], preferred_element_type=jnp.float32) + bd2_ref[...]
    d2 = jnp.maximum(d2, 0.0)
    recon = jnp.dot(d2, wd3_ref[...], preferred_element_type=jnp.float32) + bd3_ref[...]

    # single packed store: [recon(4) | mu(2) | logvar(2)]
    out_ref[...] = jnp.concatenate([recon, head], axis=1).astype(out_ref.dtype)


def _round_up(x, m):
    return ((x + m - 1) // m) * m


def _choose_tile(batch):
    """Pick batch tile TB (multiple of 8, <= MAX_TB) and padded batch size."""
    b8 = _round_up(batch, 8)
    if b8 <= 8:
        tb = 8
    else:
        # aim for >= 2 grid steps so the v7x second TensorCore gets work
        tb = min(MAX_TB, _round_up((b8 + 1) // 2, 8))
    b_pad = _round_up(b8, tb)
    return tb, b_pad


def _full_spec(shape):
    # Small weight/bias array, fully resident in VMEM for every batch tile.
    return pl.BlockSpec(shape, lambda i: (0, 0))


@jax.jit
def cvae_forward(given_rect, generated_rect, eps, params):
    """Runs the CVAE forward pass. Returns (recon_x, mu, logvar)."""
    B = given_rect.shape[0]
    TB, B_pad = _choose_tile(B)
    pad = B_pad - B

    # pack all batched operands into one slab: (B, 10) = [given | generated | eps]
    inp = jnp.concatenate(
        [
            given_rect.astype(jnp.float32),
            generated_rect.astype(jnp.float32),
            eps.astype(jnp.float32),
        ],
        axis=1,
    )
    if pad:
        inp = jnp.pad(inp, ((0, pad), (0, 0)))

    (w1, b1, w2, b2, wmu, bmu, wlv, blv, wd1, bd1, wd2, bd2, wd3, bd3) = params

    # fuse mu/logvar heads into one (H2, 4) matmul
    whead = jnp.concatenate([wmu, wlv], axis=1)
    bhead = jnp.concatenate([bmu, blv]).reshape(1, -1)

    # split decoder-layer-1 weight for cat([z, given_rect])
    wd1z, wd1g = wd1[:LATENT_DIM], wd1[LATENT_DIM:]

    b1_2d = b1.reshape(1, -1)
    b2_2d = b2.reshape(1, -1)
    bd1_2d = bd1.reshape(1, -1)
    bd2_2d = bd2.reshape(1, -1)
    bd3_2d = bd3.reshape(1, -1)

    grid = (B_pad // TB,)

    in_specs = [
        pl.BlockSpec((TB, PACK_IN), lambda i: (i, 0)),   # packed batched input
        _full_spec(w1.shape), _full_spec(b1_2d.shape),
        _full_spec(w2.shape), _full_spec(b2_2d.shape),
        _full_spec(whead.shape), _full_spec(bhead.shape),
        _full_spec(wd1z.shape), _full_spec(wd1g.shape), _full_spec(bd1_2d.shape),
        _full_spec(wd2.shape), _full_spec(bd2_2d.shape),
        _full_spec(wd3.shape), _full_spec(bd3_2d.shape),
    ]
    out_specs = pl.BlockSpec((TB, PACK_OUT), lambda i: (i, 0))
    out_shape = jax.ShapeDtypeStruct((B_pad, PACK_OUT), jnp.float32)

    packed = pl.pallas_call(
        _cvae_kernel,
        out_shape=out_shape,
        grid_spec=pltpu.PrefetchScalarGridSpec(
            num_scalar_prefetch=0,
            grid=grid,
            in_specs=in_specs,
            out_specs=out_specs,
        ),
        compiler_params=pltpu.CompilerParams(
            dimension_semantics=("parallel",),
        ),
    )(
        inp,
        w1, b1_2d,
        w2, b2_2d,
        whead, bhead,
        wd1z, wd1g, bd1_2d,
        wd2, bd2_2d,
        wd3, bd3_2d,
    )

    recon = packed[:B, :INPUT_DIM]
    mu = packed[:B, INPUT_DIM:INPUT_DIM + LATENT_DIM]
    logvar = packed[:B, INPUT_DIM + LATENT_DIM:]
    return recon, mu, logvar


def init_params(key):
    """Deterministic parameter init matching the nn.Linear shapes of CVAE."""
    shapes = [
        (2 * INPUT_DIM, H1), (H1,),            # encoder[0]
        (H1, H2), (H2,),                       # encoder[2]
        (H2, LATENT_DIM), (LATENT_DIM,),       # fc_mu
        (H2, LATENT_DIM), (LATENT_DIM,),       # fc_logvar
        (LATENT_DIM + INPUT_DIM, H2), (H2,),   # decoder[0]
        (H2, H1), (H1,),                       # decoder[2]
        (H1, INPUT_DIM), (INPUT_DIM,),         # decoder[4]
    ]
    keys = jax.random.split(key, len(shapes))
    params = []
    for k, s in zip(keys, shapes):
        fan_in = s[0]
        scale = 1.0 / jnp.sqrt(jnp.float32(fan_in if len(s) == 2 else 1.0))
        params.append(jax.random.uniform(k, s, jnp.float32, -1.0, 1.0) * scale)
    return tuple(params)


def cvae_reference(given_rect, generated_rect, eps, params):
    """Pure-JAX reference of the PyTorch forward, for correctness check."""
    (w1, b1, w2, b2, wmu, bmu, wlv, blv, wd1, bd1, wd2, bd2, wd3, bd3) = params
    x = jnp.concatenate([given_rect, generated_rect], axis=1)
    h = jax.nn.relu(x @ w1 + b1)
    h = jax.nn.relu(h @ w2 + b2)
    mu = h @ wmu + bmu
    logvar = h @ wlv + blv
    z = mu + eps * jnp.exp(0.5 * logvar)
    d = jnp.concatenate([z, given_rect], axis=1)
    d = jax.nn.relu(d @ wd1 + bd1)
    d = jax.nn.relu(d @ wd2 + bd2)
    recon = d @ wd3 + bd3
    return recon, mu, logvar


def _check(B, key, params):
    k_g, k_r, k_eps = jax.random.split(key, 3)
    given_rect = jax.random.normal(k_g, (B, INPUT_DIM), jnp.float32)
    generated_rect = jax.random.normal(k_r, (B, INPUT_DIM), jnp.float32)
    eps = jax.random.normal(k_eps, (B, LATENT_DIM), jnp.float32)

    recon, mu, logvar = cvae_forward(given_rect, generated_rect, eps, params)
    jax.block_until_ready((recon, mu, logvar))

    recon_ref, mu_ref, logvar_ref = cvae_reference(
        given_rect, generated_rect, eps, params
    )
    assert jnp.allclose(recon, recon_ref, atol=1e-4, rtol=1e-4)
    assert jnp.allclose(mu, mu_ref, atol=1e-4, rtol=1e-4)
    assert jnp.allclose(logvar, logvar_ref, atol=1e-4, rtol=1e-4)


if __name__ == "__main__":
    key = jax.random.PRNGKey(0)
    k_params, k_a, k_b = jax.random.split(key, 3)
    params = init_params(k_params)

    # B=64 -> TB=32, grid=2 (exercises the megacore/parallel path);
    # B=5  -> TB=8, single padded tile.
    _check(64, k_a, params)
    _check(5, k_b, params)

    print("KERNEL_OK")
</pallas_src>

<mosaic_0001>
module attributes {stable_mosaic.version = 11 : i64} {
  func.func @_cvae_kernel(%arg0: i32, %arg1: memref<32x10xf32, #tpu.memory_space<vmem>>, %arg2: memref<8x128xf32, #tpu.memory_space<vmem>>, %arg3: memref<1x128xf32, #tpu.memory_space<vmem>>, %arg4: memref<128x64xf32, #tpu.memory_space<vmem>>, %arg5: memref<1x64xf32, #tpu.memory_space<vmem>>, %arg6: memref<64x4xf32, #tpu.memory_space<vmem>>, %arg7: memref<1x4xf32, #tpu.memory_space<vmem>>, %arg8: memref<2x64xf32, #tpu.memory_space<vmem>>, %arg9: memref<4x64xf32, #tpu.memory_space<vmem>>, %arg10: memref<1x64xf32, #tpu.memory_space<vmem>>, %arg11: memref<64x128xf32, #tpu.memory_space<vmem>>, %arg12: memref<1x128xf32, #tpu.memory_space<vmem>>, %arg13: memref<128x4xf32, #tpu.memory_space<vmem>>, %arg14: memref<1x4xf32, #tpu.memory_space<vmem>>, %arg15: memref<32x8xf32, #tpu.memory_space<vmem>>) attributes {dimension_semantics = [#tpu.dimension_semantics<parallel>], iteration_bounds = array<i64: 2>, scalar_prefetch = 0 : i64, scratch_operands = 0 : i64, tpu.core_type = #tpu.core_type<tc>, window_params = [{transform_indices = @transform_0, window_bounds = array<i64: 32, 10>}, {pipeline_mode = #tpu.pipeline_mode<synchronous>, transform_indices = @transform_1, window_bounds = array<i64: 8, 128>}, {pipeline_mode = #tpu.pipeline_mode<synchronous>, transform_indices = @transform_2, window_bounds = array<i64: 1, 128>}, {pipeline_mode = #tpu.pipeline_mode<synchronous>, transform_indices = @transform_3, window_bounds = array<i64: 128, 64>}, {pipeline_mode = #tpu.pipeline_mode<synchronous>, transform_indices = @transform_4, window_bounds = array<i64: 1, 64>}, {pipeline_mode = #tpu.pipeline_mode<synchronous>, transform_indices = @transform_5, window_bounds = array<i64: 64, 4>}, {pipeline_mode = #tpu.pipeline_mode<synchronous>, transform_indices = @transform_6, window_bounds = array<i64: 1, 4>}, {pipeline_mode = #tpu.pipeline_mode<synchronous>, transform_indices = @transform_7, window_bounds = array<i64: 2, 64>}, {pipeline_mode = #tpu.pipeline_mode<synchronous>, transform_indices = @transform_8, window_bounds = array<i64: 4, 64>}, {pipeline_mode = #tpu.pipeline_mode<synchronous>, transform_indices = @transform_9, window_bounds = array<i64: 1, 64>}, {pipeline_mode = #tpu.pipeline_mode<synchronous>, transform_indices = @transform_10, window_bounds = array<i64: 64, 128>}, {pipeline_mode = #tpu.pipeline_mode<synchronous>, transform_indices = @transform_11, window_bounds = array<i64: 1, 128>}, {pipeline_mode = #tpu.pipeline_mode<synchronous>, transform_indices = @transform_12, window_bounds = array<i64: 128, 4>}, {pipeline_mode = #tpu.pipeline_mode<synchronous>, transform_indices = @transform_13, window_bounds = array<i64: 1, 4>}, {transform_indices = @transform_14, window_bounds = array<i64: 32, 8>}]} {
    %c0 = arith.constant 0 : index
    %c0_0 = arith.constant 0 : index
    %0 = vector.load %arg1[%c0, %c0_0] : memref<32x10xf32, #tpu.memory_space<vmem>>, vector<32x10xf32>
    %1 = vector.extract_strided_slice %0 {offsets = [0, 0], sizes = [32, 8], strides = [1, 1]} : vector<32x10xf32> to vector<32x8xf32>
    %2 = vector.extract_strided_slice %0 {offsets = [0, 0], sizes = [32, 4], strides = [1, 1]} : vector<32x10xf32> to vector<32x4xf32>
    %3 = vector.extract_strided_slice %0 {offsets = [0, 8], sizes = [32, 2], strides = [1, 1]} : vector<32x10xf32> to vector<32x2xf32>
    %c0_1 = arith.constant 0 : index
    %c0_2 = arith.constant 0 : index
    %4 = vector.load %arg2[%c0_1, %c0_2] : memref<8x128xf32, #tpu.memory_space<vmem>>, vector<8x128xf32>
    %cst = arith.constant dense<0.000000e+00> : vector<32x128xf32>
    %5 = tpu.matmul %1, %4, %cst {dimension_numbers = #tpu.dot_dimension_numbers<[1], [0], [0], [1], [0, 0, 1, 1], [], []>} : vector<32x8xf32>, vector<8x128xf32>, vector<32x128xf32> -> vector<32x128xf32>
    %c0_3 = arith.constant 0 : index
    %c0_4 = arith.constant 0 : index
    %6 = vector.load %arg3[%c0_3, %c0_4] : memref<1x128xf32, #tpu.memory_space<vmem>>, vector<1x128xf32>
    %7 = vector.broadcast %6 : vector<1x128xf32> to vector<32x128xf32>
    %8 = arith.addf %5, %7 : vector<32x128xf32>
    %cst_5 = arith.constant 0.000000e+00 : f32
    %9 = vector.broadcast %cst_5 : f32 to vector<32x128xf32>
    %10 = arith.maximumf %8, %9 : vector<32x128xf32>
    %c0_6 = arith.constant 0 : index
    %c0_7 = arith.constant 0 : index
    %11 = vector.load %arg4[%c0_6, %c0_7] : memref<128x64xf32, #tpu.memory_space<vmem>>, vector<128x64xf32>
    %cst_8 = arith.constant dense<0.000000e+00> : vector<32x64xf32>
    %12 = tpu.matmul %10, %11, %cst_8 {dimension_numbers = #tpu.dot_dimension_numbers<[1], [0], [0], [1], [0, 0, 1, 1], [], []>} : vector<32x128xf32>, vector<128x64xf32>, vector<32x64xf32> -> vector<32x64xf32>
    %c0_9 = arith.constant 0 : index
    %c0_10 = arith.constant 0 : index
    %13 = vector.load %arg5[%c0_9, %c0_10] : memref<1x64xf32, #tpu.memory_space<vmem>>, vector<1x64xf32>
    %14 = vector.broadcast %13 : vector<1x64xf32> to vector<32x64xf32>
    %15 = arith.addf %12, %14 : vector<32x64xf32>
    %cst_11 = arith.constant 0.000000e+00 : f32
    %16 = vector.broadcast %cst_11 : f32 to vector<32x64xf32>
    %17 = arith.maximumf %15, %16 : vector<32x64xf32>
    %c0_12 = arith.constant 0 : index
    %c0_13 = arith.constant 0 : index
    %18 = vector.load %arg6[%c0_12, %c0_13] : memref<64x4xf32, #tpu.memory_space<vmem>>, vector<64x4xf32>
    %cst_14 = arith.constant dense<0.000000e+00> : vector<32x4xf32>
    %19 = tpu.matmul %17, %18, %cst_14 {dimension_numbers = #tpu.dot_dimension_numbers<[1], [0], [0], [1], [0, 0, 1, 1], [], []>} : vector<32x64xf32>, vector<64x4xf32>, vector<32x4xf32> -> vector<32x4xf32>
    %c0_15 = arith.constant 0 : index
    %c0_16 = arith.constant 0 : index
    %20 = vector.load %arg7[%c0_15, %c0_16] : memref<1x4xf32, #tpu.memory_space<vmem>>, vector<1x4xf32>
    %21 = vector.broadcast %20 : vector<1x4xf32> to vector<32x4xf32>
    %22 = arith.addf %19, %21 : vector<32x4xf32>
    %23 = vector.extract_strided_slice %22 {offsets = [0, 0], sizes = [32, 2], strides = [1, 1]} : vector<32x4xf32> to vector<32x2xf32>
    %24 = vector.extract_strided_slice %22 {offsets = [0, 2], sizes = [32, 2], strides = [1, 1]} : vector<32x4xf32> to vector<32x2xf32>
    %cst_17 = arith.constant 5.000000e-01 : f32
    %25 = vector.broadcast %cst_17 : f32 to vector<32x2xf32>
    %26 = arith.mulf %25, %24 : vector<32x2xf32>
    %27 = math.exp %26 : vector<32x2xf32>
    %28 = arith.mulf %3, %27 : vector<32x2xf32>
    %29 = arith.addf %23, %28 : vector<32x2xf32>
    %c0_18 = arith.constant 0 : index
    %c0_19 = arith.constant 0 : index
    %30 = vector.load %arg8[%c0_18, %c0_19] : memref<2x64xf32, #tpu.memory_space<vmem>>, vector<2x64xf32>
    %cst_20 = arith.constant dense<0.000000e+00> : vector<32x64xf32>
    %31 = tpu.matmul %29, %30, %cst_20 {dimension_numbers = #tpu.dot_dimension_numbers<[1], [0], [0], [1], [0, 0, 1, 1], [], []>} : vector<32x2xf32>, vector<2x64xf32>, vector<32x64xf32> -> vector<32x64xf32>
    %c0_21 = arith.constant 0 : index
    %c0_22 = arith.constant 0 : index
    %32 = vector.load %arg9[%c0_21, %c0_22] : memref<4x64xf32, #tpu.memory_space<vmem>>, vector<4x64xf32>
    %cst_23 = arith.constant dense<0.000000e+00> : vector<32x64xf32>
    %33 = tpu.matmul %2, %32, %cst_23 {dimension_numbers = #tpu.dot_dimension_numbers<[1], [0], [0], [1], [0, 0, 1, 1], [], []>} : vector<32x4xf32>, vector<4x64xf32>, vector<32x64xf32> -> vector<32x64xf32>
    %34 = arith.addf %31, %33 : vector<32x64xf32>
    %c0_24 = arith.constant 0 : index
    %c0_25 = arith.constant 0 : index
    %35 = vector.load %arg10[%c0_24, %c0_25] : memref<1x64xf32, #tpu.memory_space<vmem>>, vector<1x64xf32>
    %36 = vector.broadcast %35 : vector<1x64xf32> to vector<32x64xf32>
    %37 = arith.addf %34, %36 : vector<32x64xf32>
    %cst_26 = arith.constant 0.000000e+00 : f32
    %38 = vector.broadcast %cst_26 : f32 to vector<32x64xf32>
    %39 = arith.maximumf %37, %38 : vector<32x64xf32>
    %c0_27 = arith.constant 0 : index
    %c0_28 = arith.constant 0 : index
    %40 = vector.load %arg11[%c0_27, %c0_28] : memref<64x128xf32, #tpu.memory_space<vmem>>, vector<64x128xf32>
    %cst_29 = arith.constant dense<0.000000e+00> : vector<32x128xf32>
    %41 = tpu.matmul %39, %40, %cst_29 {dimension_numbers = #tpu.dot_dimension_numbers<[1], [0], [0], [1], [0, 0, 1, 1], [], []>} : vector<32x64xf32>, vector<64x128xf32>, vector<32x128xf32> -> vector<32x128xf32>
    %c0_30 = arith.constant 0 : index
    %c0_31 = arith.constant 0 : index
    %42 = vector.load %arg12[%c0_30, %c0_31] : memref<1x128xf32, #tpu.memory_space<vmem>>, vector<1x128xf32>
    %43 = vector.broadcast %42 : vector<1x128xf32> to vector<32x128xf32>
    %44 = arith.addf %41, %43 : vector<32x128xf32>
    %cst_32 = arith.constant 0.000000e+00 : f32
    %45 = vector.broadcast %cst_32 : f32 to vector<32x128xf32>
    %46 = arith.maximumf %44, %45 : vector<32x128xf32>
    %c0_33 = arith.constant 0 : index
    %c0_34 = arith.constant 0 : index
    %47 = vector.load %arg13[%c0_33, %c0_34] : memref<128x4xf32, #tpu.memory_space<vmem>>, vector<128x4xf32>
    %cst_35 = arith.constant dense<0.000000e+00> : vector<32x4xf32>
    %48 = tpu.matmul %46, %47, %cst_35 {dimension_numbers = #tpu.dot_dimension_numbers<[1], [0], [0], [1], [0, 0, 1, 1], [], []>} : vector<32x128xf32>, vector<128x4xf32>, vector<32x4xf32> -> vector<32x4xf32>
    %c0_36 = arith.constant 0 : index
    %c0_37 = arith.constant 0 : index
    %49 = vector.load %arg14[%c0_36, %c0_37] : memref<1x4xf32, #tpu.memory_space<vmem>>, vector<1x4xf32>
    %50 = vector.broadcast %49 : vector<1x4xf32> to vector<32x4xf32>
    %51 = arith.addf %48, %50 : vector<32x4xf32>
    %52 = tpu.concatenate %51, %22 in 1 : vector<32x4xf32>, vector<32x4xf32> -> vector<32x8xf32>
    %c0_38 = arith.constant 0 : index
    %c0_39 = arith.constant 0 : index
    %53 = vector.load %arg15[%c0_38, %c0_39] : memref<32x8xf32, #tpu.memory_space<vmem>>, vector<32x8xf32>
    tpu.vector_store %arg15[%c0_38, %c0_39], %52 {strides = array<i32>} : memref<32x8xf32, #tpu.memory_space<vmem>>, vector<32x8xf32>,
    return
  }
  func.func @transform_0(%arg0: i32) -> (i32, i32) {
    %c0_i32 = arith.constant 0 : i32
    %c0_i32_0 = arith.constant 0 : i32
    return %arg0, %c0_i32 : i32, i32
  }
  func.func @transform_1(%arg0: i32) -> (i32, i32) {
    %c0_i32 = arith.constant 0 : i32
    %c0_i32_0 = arith.constant 0 : i32
    %c0_i32_1 = arith.constant 0 : i32
    return %c0_i32, %c0_i32_0 : i32, i32
  }
  func.func @transform_2(%arg0: i32) -> (i32, i32) {
    %c0_i32 = arith.constant 0 : i32
    %c0_i32_0 = arith.constant 0 : i32
    %c0_i32_1 = arith.constant 0 : i32
    return %c0_i32, %c0_i32_0 : i32, i32
  }
  func.func @transform_3(%arg0: i32) -> (i32, i32) {
    %c0_i32 = arith.constant 0 : i32
    %c0_i32_0 = arith.constant 0 : i32
    %c0_i32_1 = arith.constant 0 : i32
    return %c0_i32, %c0_i32_0 : i32, i32
  }
  func.func @transform_4(%arg0: i32) -> (i32, i32) {
    %c0_i32 = arith.constant 0 : i32
    %c0_i32_0 = arith.constant 0 : i32
    %c0_i32_1 = arith.constant 0 : i32
    return %c0_i32, %c0_i32_0 : i32, i32
  }
  func.func @transform_5(%arg0: i32) -> (i32, i32) {
    %c0_i32 = arith.constant 0 : i32
    %c0_i32_0 = arith.constant 0 : i32
    %c0_i32_1 = arith.constant 0 : i32
    return %c0_i32, %c0_i32_0 : i32, i32
  }
  func.func @transform_6(%arg0: i32) -> (i32, i32) {
    %c0_i32 = arith.constant 0 : i32
    %c0_i32_0 = arith.constant 0 : i32
    %c0_i32_1 = arith.constant 0 : i32
    return %c0_i32, %c0_i32_0 : i32, i32
  }
  func.func @transform_7(%arg0: i32) -> (i32, i32) {
    %c0_i32 = arith.constant 0 : i32
    %c0_i32_0 = arith.constant 0 : i32
    %c0_i32_1 = arith.constant 0 : i32
    return %c0_i32, %c0_i32_0 : i32, i32
  }
  func.func @transform_8(%arg0: i32) -> (i32, i32) {
    %c0_i32 = arith.constant 0 : i32
    %c0_i32_0 = arith.constant 0 : i32
    %c0_i32_1 = arith.constant 0 : i32
    return %c0_i32, %c0_i32_0 : i32, i32
  }
  func.func @transform_9(%arg0: i32) -> (i32, i32) {
    %c0_i32 = arith.constant 0 : i32
    %c0_i32_0 = arith.constant 0 : i32
    %c0_i32_1 = arith.constant 0 : i32
    return %c0_i32, %c0_i32_0 : i32, i32
  }
  func.func @transform_10(%arg0: i32) -> (i32, i32) {
    %c0_i32 = arith.constant 0 : i32
    %c0_i32_0 = arith.constant 0 : i32
    %c0_i32_1 = arith.constant 0 : i32
    return %c0_i32, %c0_i32_0 : i32, i32
  }
  func.func @transform_11(%arg0: i32) -> (i32, i32) {
    %c0_i32 = arith.constant 0 : i32
    %c0_i32_0 = arith.constant 0 : i32
    %c0_i32_1 = arith.constant 0 : i32
    return %c0_i32, %c0_i32_0 : i32, i32
  }
  func.func @transform_12(%arg0: i32) -> (i32, i32) {
    %c0_i32 = arith.constant 0 : i32
    %c0_i32_0 = arith.constant 0 : i32
    %c0_i32_1 = arith.constant 0 : i32
    return %c0_i32, %c0_i32_0 : i32, i32
  }
  func.func @transform_13(%arg0: i32) -> (i32, i32) {
    %c0_i32 = arith.constant 0 : i32
    %c0_i32_0 = arith.constant 0 : i32
    %c0_i32_1 = arith.constant 0 : i32
    return %c0_i32, %c0_i32_0 : i32, i32
  }
  func.func @transform_14(%arg0: i32) -> (i32, i32) {
    %c0_i32 = arith.constant 0 : i32
    %c0_i32_0 = arith.constant 0 : i32
    return %arg0, %c0_i32 : i32, i32
  }
}

</mosaic_0001>

<llo_original>
// kernel: cvae_forward.1
$region0: #{cvae_forward.1}
  #allocation0 [shape = 'u32[]', space=smem, size = 0x4, offset = 0x4, fixed_abs, tag = 'smem constant byte address 0x4 - core index']
  #allocation1 [shape = 'u32[144,128]{1,0:T(1,128)}', space=vmem, size = 0x12000, scoped, tag = 'internal scratch']
  %s0 = inlined_call_operand.vmem [shape: f32[64,10], index: 0, kind: input, shape index: {}]
  %s1 = inlined_call_operand.vmem [shape: f32[8,128], index: 1, kind: input, shape index: {}]
  %s2 = inlined_call_operand.vmem [shape: f32[1,128], index: 2, kind: input, shape index: {}]
  %s3 = inlined_call_operand.vmem [shape: f32[128,64], index: 3, kind: input, shape index: {}]
  %s4 = inlined_call_operand.vmem [shape: f32[1,64], index: 4, kind: input, shape index: {}]
  %s5 = inlined_call_operand.vmem [shape: f32[64,4], index: 5, kind: input, shape index: {}]
  %s6 = inlined_call_operand.vmem [shape: f32[1,4], index: 6, kind: input, shape index: {}]
  %s7 = inlined_call_operand.vmem [shape: f32[2,64], index: 7, kind: input, shape index: {}]
  %s8 = inlined_call_operand.vmem [shape: f32[4,64], index: 8, kind: input, shape index: {}]
  %s9 = inlined_call_operand.vmem [shape: f32[1,64], index: 9, kind: input, shape index: {}]
  %s10 = inlined_call_operand.vmem [shape: f32[64,128], index: 10, kind: input, shape index: {}]
  %s11 = inlined_call_operand.vmem [shape: f32[1,128], index: 11, kind: input, shape index: {}]
  %s12 = inlined_call_operand.vmem [shape: f32[128,4], index: 12, kind: input, shape index: {}]
  %s13 = inlined_call_operand.vmem [shape: f32[1,4], index: 13, kind: input, shape index: {}]
  %s14 = inlined_call_operand.vmem [shape: f32[64,8], index: 14, kind: output, shape index: {}]
  %s15 = sld [smem:[#allocation0]]
  $region89: #{cvae_forward.1} parent=0
    _
  %s17 = ssub.s32 1, %s15
  %s18 = scalar_select 0, %s17, %s15
  loop: start=0, step=1, limit=4
  $region2: #{cvae_forward.1} parent=0 // loop_pre_header
    _
  $region3: #{cvae_forward.1} parent=0 // loop_header
    %s20 = sphi 0, %s24
    %p21 = scmp.ge.s32.totalorder %s20, 4
    %s30 = sphi 0, %s32
    %s33 = sphi 0, %s30
    %s34 = sphi 0, %s33
    %s50 = sphi 0, %s34
    %s54 = sphi 0, %s54
    %s56 = sphi 0, %s54
    %s57 = sphi 0, %s56
    %s71 = sphi 0, %s57
    %s75 = sphi 0, %s75
    %s77 = sphi 0, %s75
    %s78 = sphi 0, %s77
    %s92 = sphi 0, %s78
    %s96 = sphi 0, %s96
    %s98 = sphi 0, %s96
    %s99 = sphi 0, %s98
    %s113 = sphi 0, %s99
    %s117 = sphi 0, %s117
    %s119 = sphi 0, %s117
    %s120 = sphi 0, %s119
    %s134 = sphi 0, %s120
    %s138 = sphi 0, %s138
    %s140 = sphi 0, %s138
    %s141 = sphi 0, %s140
    %s155 = sphi 0, %s141
    %s159 = sphi 0, %s159
    %s161 = sphi 0, %s159
    %s162 = sphi 0, %s161
    %s176 = sphi 0, %s162
    %s180 = sphi 0, %s180
    %s182 = sphi 0, %s180
    %s183 = sphi 0, %s182
    %s197 = sphi 0, %s183
    %s201 = sphi 0, %s201
    %s203 = sphi 0, %s201
    %s204 = sphi 0, %s203
    %s218 = sphi 0, %s204
    %s222 = sphi 0, %s222
    %s224 = sphi 0, %s222
    %s225 = sphi 0, %s224
    %s239 = sphi 0, %s225
    %s243 = sphi 0, %s243
    %s245 = sphi 0, %s243
    %s246 = sphi 0, %s245
    %s260 = sphi 0, %s246
    %s264 = sphi 0, %s264
    %s266 = sphi 0, %s264
    %s267 = sphi 0, %s266
    %s281 = sphi 0, %s267
    %s285 = sphi 0, %s285
    %s287 = sphi 0, %s285
    %s288 = sphi 0, %s287
    %s302 = sphi 0, %s288
    %s306 = sphi 0, %s306
    %s308 = sphi 0, %s306
    %s309 = sphi 0, %s308
    %s323 = sphi 0, %s309
    %s329 = sphi 0, %s331
    %s332 = sphi 0, %s329
    %s333 = sphi 0, %s332
    %s349 = sphi 0, %s333
  $region4: #{cvae_forward.1} parent=0 // loop_header_branch
    %23 = sbr.rel (%p21) target = $region8
  $region5: #{cvae_forward.1} parent=0 // loop_body
    %s25 = ssub.s32 %s20, 1
    %s26 = ssub.s32 %s20, 2
    %s27 = sadd.s32 %s20, 1
    %s28 = ssub.s32 %s20, %s27
    %p29 = scmp.eq.s32.totalorder %s28, 0
    %s31 = sadd.s32 %s30, 1
    %s32 = scalar_select %p29, %s30, %s31
    %p35 = pneg %p29
    %p36 = scmp.eq.s32.totalorder %s20, 1
    %p37 = por %p35, %p36
    %p38 = scmp.ne.s32.totalorder %s30, %s33
    %p39 = scmp.eq.s32.totalorder %s20, 0
    %p40 = por %p38, %p39
    %p41 = scmp.ne.s32.totalorder %s30, %s33
    %p42 = scmp.eq.s32.totalorder %s25, 1
    %p43 = por %p41, %p42
    %p44 = scmp.ne.s32.totalorder %s33, %s34
    %p45 = scmp.eq.s32.totalorder %s25, 0
    %p46 = por %p44, %p45
    %p47 = scmp.ne.s32.totalorder %s33, %s34
    %p48 = scmp.eq.s32.totalorder %s26, 1
    %p49 = por %p47, %p48
    %p51 = scmp.ne.s32.totalorder %s34, %s50
    %p52 = scmp.eq.s32.totalorder %s26, 0
    %p53 = por %p51, %p52
    %s55 = sadd.s32 %s54, 1
    %p58 = scmp.eq.s32.totalorder %s20, 1
    %p59 = scmp.ne.s32.totalorder %s54, %s56
    %p60 = scmp.eq.s32.totalorder %s20, 0
    %p61 = por %p59, %p60
    %p62 = scmp.ne.s32.totalorder %s54, %s56
    %p63 = scmp.eq.s32.totalorder %s25, 1
    %p64 = por %p62, %p63
    %p65 = scmp.ne.s32.totalorder %s56, %s57
    %p66 = scmp.eq.s32.totalorder %s25, 0
    %p67 = por %p65, %p66
    %p68 = scmp.ne.s32.totalorder %s56, %s57
    %p69 = scmp.eq.s32.totalorder %s26, 1
    %p70 = por %p68, %p69
    %p72 = scmp.ne.s32.totalorder %s57, %s71
    %p73 = scmp.eq.s32.totalorder %s26, 0
    %p74 = por %p72, %p73
    %s76 = sadd.s32 %s75, 1
    %p79 = scmp.eq.s32.totalorder %s20, 1
    %p80 = scmp.ne.s32.totalorder %s75, %s77
    %p81 = scmp.eq.s32.totalorder %s20, 0
    %p82 = por %p80, %p81
    %p83 = scmp.ne.s32.totalorder %s75, %s77
    %p84 = scmp.eq.s32.totalorder %s25, 1
    %p85 = por %p83, %p84
    %p86 = scmp.ne.s32.totalorder %s77, %s78
    %p87 = scmp.eq.s32.totalorder %s25, 0
    %p88 = por %p86, %p87
    %p89 = scmp.ne.s32.totalorder %s77, %s78
    %p90 = scmp.eq.s32.totalorder %s26, 1
    %p91 = por %p89, %p90
    %p93 = scmp.ne.s32.totalorder %s78, %s92
    %p94 = scmp.eq.s32.totalorder %s26, 0
    %p95 = por %p93, %p94
    %s97 = sadd.s32 %s96, 1
    %p100 = scmp.eq.s32.totalorder %s20, 1
    %p101 = scmp.ne.s32.totalorder %s96, %s98
    %p102 = scmp.eq.s32.totalorder %s20, 0
    %p103 = por %p101, %p102
    %p104 = scmp.ne.s32.totalorder %s96, %s98
    %p105 = scmp.eq.s32.totalorder %s25, 1
    %p106 = por %p104, %p105
    %p107 = scmp.ne.s32.totalorder %s98, %s99
    %p108 = scmp.eq.s32.totalorder %s25, 0
    %p109 = por %p107, %p108
    %p110 = scmp.ne.s32.totalorder %s98, %s99
    %p111 = scmp.eq.s32.totalorder %s26, 1
    %p112 = por %p110, %p111
    %p114 = scmp.ne.s32.totalorder %s99, %s113
    %p115 = scmp.eq.s32.totalorder %s26, 0
    %p116 = por %p114, %p115
    %s118 = sadd.s32 %s117, 1
    %p121 = scmp.eq.s32.totalorder %s20, 1
    %p122 = scmp.ne.s32.totalorder %s117, %s119
    %p123 = scmp.eq.s32.totalorder %s20, 0
    %p124 = por %p122, %p123
    %p125 = scmp.ne.s32.totalorder %s117, %s119
    %p126 = scmp.eq.s32.totalorder %s25, 1
    %p127 = por %p125, %p126
    %p128 = scmp.ne.s32.totalorder %s119, %s120
    %p129 = scmp.eq.s32.totalorder %s25, 0
    %p130 = por %p128, %p129
    %p131 = scmp.ne.s32.totalorder %s119, %s120
    %p132 = scmp.eq.s32.totalorder %s26, 1
    %p133 = por %p131, %p132
    %p135 = scmp.ne.s32.totalorder %s120, %s134
    %p136 = scmp.eq.s32.totalorder %s26, 0
    %p137 = por %p135, %p136
    %s139 = sadd.s32 %s138, 1
    %p142 = scmp.eq.s32.totalorder %s20, 1
    %p143 = scmp.ne.s32.totalorder %s138, %s140
    %p144 = scmp.eq.s32.totalorder %s20, 0
    %p145 = por %p143, %p144
    %p146 = scmp.ne.s32.totalorder %s138, %s140
    %p147 = scmp.eq.s32.totalorder %s25, 1
    %p148 = por %p146, %p147
    %p149 = scmp.ne.s32.totalorder %s140, %s141
    %p150 = scmp.eq.s32.totalorder %s25, 0
    %p151 = por %p149, %p150
    %p152 = scmp.ne.s32.totalorder %s140, %s141
    %p153 = scmp.eq.s32.totalorder %s26, 1
    %p154 = por %p152, %p153
    %p156 = scmp.ne.s32.totalorder %s141, %s155
    %p157 = scmp.eq.s32.totalorder %s26, 0
    %p158 = por %p156, %p157
    %s160 = sadd.s32 %s159, 1
    %p163 = scmp.eq.s32.totalorder %s20, 1
    %p164 = scmp.ne.s32.totalorder %s159, %s161
    %p165 = scmp.eq.s32.totalorder %s20, 0
    %p166 = por %p164, %p165
    %p167 = scmp.ne.s32.totalorder %s159, %s161
    %p168 = scmp.eq.s32.totalorder %s25, 1
    %p169 = por %p167, %p168
    %p170 = scmp.ne.s32.totalorder %s161, %s162
    %p171 = scmp.eq.s32.totalorder %s25, 0
    %p172 = por %p170, %p171
    %p173 = scmp.ne.s32.totalorder %s161, %s162
    %p174 = scmp.eq.s32.totalorder %s26, 1
    %p175 = por %p173, %p174
    %p177 = scmp.ne.s32.totalorder %s162, %s176
    %p178 = scmp.eq.s32.totalorder %s26, 0
    %p179 = por %p177, %p178
    %s181 = sadd.s32 %s180, 1
    %p184 = scmp.eq.s32.totalorder %s20, 1
    %p185 = scmp.ne.s32.totalorder %s180, %s182
    %p186 = scmp.eq.s32.totalorder %s20, 0
    %p187 = por %p185, %p186
    %p188 = scmp.ne.s32.totalorder %s180, %s182
    %p189 = scmp.eq.s32.totalorder %s25, 1
    %p190 = por %p188, %p189
    %p191 = scmp.ne.s32.totalorder %s182, %s183
    %p192 = scmp.eq.s32.totalorder %s25, 0
    %p193 = por %p191, %p192
    %p194 = scmp.ne.s32.totalorder %s182, %s183
    %p195 = scmp.eq.s32.totalorder %s26, 1
    %p196 = por %p194, %p195
    %p198 = scmp.ne.s32.totalorder %s183, %s197
    %p199 = scmp.eq.s32.totalorder %s26, 0
    %p200 = por %p198, %p199
    %s202 = sadd.s32 %s201, 1
    %p205 = scmp.eq.s32.totalorder %s20, 1
    %p206 = scmp.ne.s32.totalorder %s201, %s203
    %p207 = scmp.eq.s32.totalorder %s20, 0
    %p208 = por %p206, %p207
    %p209 = scmp.ne.s32.totalorder %s201, %s203
    %p210 = scmp.eq.s32.totalorder %s25, 1
    %p211 = por %p209, %p210
    %p212 = scmp.ne.s32.totalorder %s203, %s204
    %p213 = scmp.eq.s32.totalorder %s25, 0
    %p214 = por %p212, %p213
    %p215 = scmp.ne.s32.totalorder %s203, %s204
    %p216 = scmp.eq.s32.totalorder %s26, 1
    %p217 = por %p215, %p216
    %p219 = scmp.ne.s32.totalorder %s204, %s218
    %p220 = scmp.eq.s32.totalorder %s26, 0
    %p221 = por %p219, %p220
    %s223 = sadd.s32 %s222, 1
    %p226 = scmp.eq.s32.totalorder %s20, 1
    %p227 = scmp.ne.s32.totalorder %s222, %s224
    %p228 = scmp.eq.s32.totalorder %s20, 0
    %p229 = por %p227, %p228
    %p230 = scmp.ne.s32.totalorder %s222, %s224
    %p231 = scmp.eq.s32.totalorder %s25, 1
    %p232 = por %p230, %p231
    %p233 = scmp.ne.s32.totalorder %s224, %s225
    %p234 = scmp.eq.s32.totalorder %s25, 0
    %p235 = por %p233, %p234
    %p236 = scmp.ne.s32.totalorder %s224, %s225
    %p237 = scmp.eq.s32.totalorder %s26, 1
    %p238 = por %p236, %p237
    %p240 = scmp.ne.s32.totalorder %s225, %s239
    %p241 = scmp.eq.s32.totalorder %s26, 0
    %p242 = por %p240, %p241
    %s244 = sadd.s32 %s243, 1
    %p247 = scmp.eq.s32.totalorder %s20, 1
    %p248 = scmp.ne.s32.totalorder %s243, %s245
    %p249 = scmp.eq.s32.totalorder %s20, 0
    %p250 = por %p248, %p249
    %p251 = scmp.ne.s32.totalorder %s243, %s245
    %p252 = scmp.eq.s32.totalorder %s25, 1
    %p253 = por %p251, %p252
    %p254 = scmp.ne.s32.totalorder %s245, %s246
    %p255 = scmp.eq.s32.totalorder %s25, 0
    %p256 = por %p254, %p255
    %p257 = scmp.ne.s32.totalorder %s245, %s246
    %p258 = scmp.eq.s32.totalorder %s26, 1
    %p259 = por %p257, %p258
    %p261 = scmp.ne.s32.totalorder %s246, %s260
    %p262 = scmp.eq.s32.totalorder %s26, 0
    %p263 = por %p261, %p262
    %s265 = sadd.s32 %s264, 1
    %p268 = scmp.eq.s32.totalorder %s20, 1
    %p269 = scmp.ne.s32.totalorder %s264, %s266
    %p270 = scmp.eq.s32.totalorder %s20, 0
    %p271 = por %p269, %p270
    %p272 = scmp.ne.s32.totalorder %s264, %s266
    %p273 = scmp.eq.s32.totalorder %s25, 1
    %p274 = por %p272, %p273
    %p275 = scmp.ne.s32.totalorder %s266, %s267
    %p276 = scmp.eq.s32.totalorder %s25, 0
    %p277 = por %p275, %p276
    %p278 = scmp.ne.s32.totalorder %s266, %s267
    %p279 = scmp.eq.s32.totalorder %s26, 1
    %p280 = por %p278, %p279
    %p282 = scmp.ne.s32.totalorder %s267, %s281
    %p283 = scmp.eq.s32.totalorder %s26, 0
    %p284 = por %p282, %p283
    %s286 = sadd.s32 %s285, 1
    %p289 = scmp.eq.s32.totalorder %s20, 1
    %p290 = scmp.ne.s32.totalorder %s285, %s287
    %p291 = scmp.eq.s32.totalorder %s20, 0
    %p292 = por %p290, %p291
    %p293 = scmp.ne.s32.totalorder %s285, %s287
    %p294 = scmp.eq.s32.totalorder %s25, 1
    %p295 = por %p293, %p294
    %p296 = scmp.ne.s32.totalorder %s287, %s288
    %p297 = scmp.eq.s32.totalorder %s25, 0
    %p298 = por %p296, %p297
    %p299 = scmp.ne.s32.totalorder %s287, %s288
    %p300 = scmp.eq.s32.totalorder %s26, 1
    %p301 = por %p299, %p300
    %p303 = scmp.ne.s32.totalorder %s288, %s302
    %p304 = scmp.eq.s32.totalorder %s26, 0
    %p305 = por %p303, %p304
    %s307 = sadd.s32 %s306, 1
    %p310 = scmp.eq.s32.totalorder %s20, 1
    %p311 = scmp.ne.s32.totalorder %s306, %s308
    %p312 = scmp.eq.s32.totalorder %s20, 0
    %p313 = por %p311, %p312
    %p314 = scmp.ne.s32.totalorder %s306, %s308
    %p315 = scmp.eq.s32.totalorder %s25, 1
    %p316 = por %p314, %p315
    %p317 = scmp.ne.s32.totalorder %s308, %s309
    %p318 = scmp.eq.s32.totalorder %s25, 0
    %p319 = por %p317, %p318
    %p320 = scmp.ne.s32.totalorder %s308, %s309
    %p321 = scmp.eq.s32.totalorder %s26, 1
    %p322 = por %p320, %p321
    %p324 = scmp.ne.s32.totalorder %s309, %s323
    %p325 = scmp.eq.s32.totalorder %s26, 0
    %p326 = por %p324, %p325
    %s327 = ssub.s32 %s20, %s27
    %p328 = scmp.eq.s32.totalorder %s327, 0
    %s330 = sadd.s32 %s329, 1
    %s331 = scalar_select %p328, %s329, %s330
    %p334 = pneg %p328
    %p335 = scmp.eq.s32.totalorder %s20, 1
    %p336 = por %p334, %p335
    %p337 = scmp.ne.s32.totalorder %s329, %s332
    %p338 = scmp.eq.s32.totalorder %s20, 0
    %p339 = por %p337, %p338
    %p340 = scmp.ne.s32.totalorder %s329, %s332
    %p341 = scmp.eq.s32.totalorder %s25, 1
    %p342 = por %p340, %p341
    %p343 = scmp.ne.s32.totalorder %s332, %s333
    %p344 = scmp.eq.s32.totalorder %s25, 0
    %p345 = por %p343, %p344
    %p346 = scmp.ne.s32.totalorder %s332, %s333
    %p347 = scmp.eq.s32.totalorder %s26, 1
    %p348 = por %p346, %p347
    %p350 = scmp.ne.s32.totalorder %s333, %s349
    %p351 = scmp.eq.s32.totalorder %s26, 0
    %p352 = por %p350, %p351
    %p353 = scmp.le.s32.totalorder 1, %s20
    %p354 = scmp.lt.s32.totalorder %s20, 3
    %p355 = pnand %p353, %p354
    %p356 = pneg %p355
    // Predicated region
    $region9: #{cvae_forward.1} parent=5 // pred_check
      _
    $region10: #{cvae_forward.1} parent=5 // pred_check_branch
      %358 = sbr.rel (%p355) target = $region12
    $region11: #{cvae_forward.1} parent=5 // pred_region
      %s359 = ssub.s32 %s20, 1
      // Predicated region
      $region13: #{cvae_forward.1} parent=11 // pred_check
        %p360 = pneg %p67
      $region14: #{cvae_forward.1} parent=11 // pred_check_branch
        %362 = sbr.rel (%p360) target = $region16
      $region15: #{cvae_forward.1} parent=11 // pred_region
        _
      $region16: #{cvae_forward.1} parent=11 // pred_fallthru
        _
      // Predicated region
      $region17: #{cvae_forward.1} parent=11 // pred_check
        %p363 = pneg %p88
      $region18: #{cvae_forward.1} parent=11 // pred_check_branch
        %365 = sbr.rel (%p363) target = $region20
      $region19: #{cvae_forward.1} parent=11 // pred_region
        _
      $region20: #{cvae_forward.1} parent=11 // pred_fallthru
        _
      // Predicated region
      $region21: #{cvae_forward.1} parent=11 // pred_check
        %p366 = pneg %p109
      $region22: #{cvae_forward.1} parent=11 // pred_check_branch
        %368 = sbr.rel (%p366) target = $region24
      $region23: #{cvae_forward.1} parent=11 // pred_region
        _
      $region24: #{cvae_forward.1} parent=11 // pred_fallthru
        _
      // Predicated region
      $region25: #{cvae_forward.1} parent=11 // pred_check
        %p369 = pneg %p130
      $region26: #{cvae_forward.1} parent=11 // pred_check_branch
        %371 = sbr.rel (%p369) target = $region28
      $region27: #{cvae_forward.1} parent=11 // pred_region
        _
      $region28: #{cvae_forward.1} parent=11 // pred_fallthru
        _
      // Predicated region
      $region29: #{cvae_forward.1} parent=11 // pred_check
        %p372 = pneg %p151
      $region30: #{cvae_forward.1} parent=11 // pred_check_branch
        %374 = sbr.rel (%p372) target = $region32
      $region31: #{cvae_forward.1} parent=11 // pred_region
        _
      $region32: #{cvae_forward.1} parent=11 // pred_fallthru
        _
      // Predicated region
      $region33: #{cvae_forward.1} parent=11 // pred_check
        %p375 = pneg %p172
      $region34: #{cvae_forward.1} parent=11 // pred_check_branch
        %377 = sbr.rel (%p375) target = $region36
      $region35: #{cvae_forward.1} parent=11 // pred_region
        _
      $region36: #{cvae_forward.1} parent=11 // pred_fallthru
        _
      // Predicated region
      $region37: #{cvae_forward.1} parent=11 // pred_check
        %p378 = pneg %p193
      $region38: #{cvae_forward.1} parent=11 // pred_check_branch
        %380 = sbr.rel (%p378) target = $region40
      $region39: #{cvae_forward.1} parent=11 // pred_region
        _
      $region40: #{cvae_forward.1} parent=11 // pred_fallthru
        _
      // Predicated region
      $region41: #{cvae_forward.1} parent=11 // pred_check
        %p381 = pneg %p214
      $region42: #{cvae_forward.1} parent=11 // pred_check_branch
        %383 = sbr.rel (%p381) target = $region44
      $region43: #{cvae_forward.1} parent=11 // pred_region
        _
      $region44: #{cvae_forward.1} parent=11 // pred_fallthru
        _
      // Predicated region
      $region45: #{cvae_forward.1} parent=11 // pred_check
        %p384 = pneg %p235
      $region46: #{cvae_forward.1} parent=11 // pred_check_branch
        %386 = sbr.rel (%p384) target = $region48
      $region47: #{cvae_forward.1} parent=11 // pred_region
        _
      $region48: #{cvae_forward.1} parent=11 // pred_fallthru
        _
      // Predicated region
      $region49: #{cvae_forward.1} parent=11 // pred_check
        %p387 = pneg %p256
      $region50: #{cvae_forward.1} parent=11 // pred_check_branch
        %389 = sbr.rel (%p387) target = $region52
      $region51: #{cvae_forward.1} parent=11 // pred_region
        _
      $region52: #{cvae_forward.1} parent=11 // pred_fallthru
        _
      // Predicated region
      $region53: #{cvae_forward.1} parent=11 // pred_check
        %p390 = pneg %p277
      $region54: #{cvae_forward.1} parent=11 // pred_check_branch
        %392 = sbr.rel (%p390) target = $region56
      $region55: #{cvae_forward.1} parent=11 // pred_region
        _
      $region56: #{cvae_forward.1} parent=11 // pred_fallthru
        _
      // Predicated region
      $region57: #{cvae_forward.1} parent=11 // pred_check
        %p393 = pneg %p298
      $region58: #{cvae_forward.1} parent=11 // pred_check_branch
        %395 = sbr.rel (%p393) target = $region60
      $region59: #{cvae_forward.1} parent=11 // pred_region
        _
      $region60: #{cvae_forward.1} parent=11 // pred_fallthru
        _
      // Predicated region
      $region61: #{cvae_forward.1} parent=11 // pred_check
        %p396 = pneg %p319
      $region62: #{cvae_forward.1} parent=11 // pred_check_branch
        %398 = sbr.rel (%p396) target = $region64
      $region63: #{cvae_forward.1} parent=11 // pred_region
        _
      $region64: #{cvae_forward.1} parent=11 // pred_fallthru
        _
    $region12: #{cvae_forward.1} parent=5 // pred_fallthru
      _
    %p399 = scmp.lt.s32.totalorder %s20, 2
    // Predicated region
    $region65: #{cvae_forward.1} parent=5 // pred_check
      %p400 = pneg %p399
    $region66: #{cvae_forward.1} parent=5 // pred_check_branch
      %402 = sbr.rel (%p400) target = $region68
    $region67: #{cvae_forward.1} parent=5 // pred_region
      // Predicated region
      $region69: #{cvae_forward.1} parent=67 // pred_check
        %p403 = pneg %p40
      $region70: #{cvae_forward.1} parent=67 // pred_check_branch
        %405 = sbr.rel (%p403) target = $region72
      $region71: #{cvae_forward.1} parent=67 // pred_region
        %s406 = smul.u32 4, %s20
        %p407 = scmp.lt.s32.totalorder %s406, 7
        %s408 = scalar_select %p407, %s406, 7
        %s409 = smul.addr %s408, 8
        %s410 = scalar_lea.vmem %s0, %s409
        %s411 = smul.u32 4, %s20
      $region72: #{cvae_forward.1} parent=67 // pred_fallthru
        _
    $region68: #{cvae_forward.1} parent=5 // pred_fallthru
      _
    %p412 = scmp.le.s32.totalorder 1, %s20
    %p413 = scmp.lt.s32.totalorder %s20, 3
    %p414 = pnand %p412, %p413
    %p415 = pneg %p414
    // Predicated region
    $region73: #{cvae_forward.1} parent=5 // pred_check
      _
    $region74: #{cvae_forward.1} parent=5 // pred_check_branch
      %417 = sbr.rel (%p414) target = $region76
    $region75: #{cvae_forward.1} parent=5 // pred_region
      %s418 = ssub.s32 %s20, 1
      %s419 = smul.u32 4, %s25
      %p420 = scmp.lt.s32.totalorder %s419, 7
      %s421 = scalar_select %p420, %s419, 7
      %s422 = smul.addr %s421, 8
      %s423 = scalar_lea.vmem %s0, %s422
      %p424 = pneg %p46
      %p425 = pneg %p43
      %p426 = pneg %p67
      %p427 = pneg %p64
      %p428 = pneg %p88
      %p429 = pneg %p85
      %p430 = pneg %p109
      %p431 = pneg %p106
      %p432 = pneg %p130
      %p433 = pneg %p127
      %p434 = pneg %p151
      %p435 = pneg %p148
      %p436 = pneg %p172
      %p437 = pneg %p169
      %p438 = pneg %p193
      %p439 = pneg %p190
      %p440 = pneg %p214
      %p441 = pneg %p211
      %p442 = pneg %p235
      %p443 = pneg %p232
      %p444 = pneg %p256
      %p445 = pneg %p253
      %p446 = pneg %p277
      %p447 = pneg %p274
      %p448 = pneg %p298
      %p449 = pneg %p295
      %p450 = pneg %p319
      %p451 = pneg %p316
      %p452 = pneg %p345
      %p453 = pneg %p342
      %s454 = smul.u32 4, %s25
      %p455 = scmp.lt.s32.totalorder %s454, 7
      %s456 = scalar_select %p455, %s454, 7
      %s457 = smul.addr %s456, 8
      %s458 = scalar_lea.vmem %s14, %s457
      %s459 = smul.u32 4, %s25
      %p460 = scmp.lt.s32.totalorder %s459, 7
      %s461 = scalar_select %p460, %s459, 7
      %s462 = smul.addr %s461, 8
      %s463 = scalar_lea.vmem %s0, %s462
      %s464 = smul.u32 4, %s25
      %s465 = smul.u32 4, %s25
      %p466 = scmp.lt.s32.totalorder %s465, 7
      %s467 = scalar_select %p466, %s465, 7
      %s468 = smul.addr %s467, 8
      %s469 = scalar_lea.vmem %s14, %s468
      %s470 = smul.u32 4, %s25
      %v471 = vld [vmem:[%s463] sm:$0xff]
      %v472 = vld [vmem:[%s463 + $0x8] sm:$0xff]
      %v473 = vld [vmem:[%s463 + $0x10] sm:$0xff]
      %v474 = vld [vmem:[%s463 + $0x18] sm:$0xff]
      %v475 = vld [vmem:[%s1] sm:$0xff]
      %v476 = vld [vmem:[%s2] sm:$0x1]
      %v478 = vlaneseq
      %v479 = vshrl.u32 %v478, 7
      %v480 = vsub.s32 0, %v479
      %v481 = vrot.slane %v476, %v480
      %vm483 = vcmask 64512
      %v485 = vsel %vm483, %v471, 0
      %v488 = vsel %vm483, %v472, 0
      %v491 = vsel %vm483, %v473, 0
      %v494 = vsel %vm483, %v474, 0
      %496 = vmatprep.subr.mxu0 0.0
      %497 = vmatpush1.msra.mxu0 %v475
      %498 = vmatprep.subr.mxu0 0.0
      %499 = vmatpush1.msra.mxu0 0.0
      %500 = vmatprep.subr.mxu0 0.0
      %501 = vmatpush1.msra.mxu0 0.0
      %502 = vmatprep.subr.mxu0 0.0
      %503 = vmatpush1.msra.mxu0 0.0
      %504 = vmatprep.subr.mxu0 0.0
      %505 = vmatpush1.msra.mxu0 0.0
      %506 = vmatprep.subr.mxu0 0.0
      %507 = vmatpush1.msra.mxu0 0.0
      %508 = vmatprep.subr.mxu0 0.0
      %509 = vmatpush1.msra.mxu0 0.0
      %510 = vmatprep.subr.mxu0 0.0
      %511 = vmatpush1.msra.mxu0 0.0
      %512 = vmatprep.subr.mxu0 0.0
      %513 = vmatpush1.msra.mxu0 0.0
      %514 = vmatprep.subr.mxu0 0.0
      %515 = vmatpush1.msra.mxu0 0.0
      %516 = vmatprep.subr.mxu0 0.0
      %517 = vmatpush1.msra.mxu0 0.0
      %518 = vmatprep.subr.mxu0 0.0
      %519 = vmatpush1.msra.mxu0 0.0
      %520 = vmatprep.subr.mxu0 0.0
      %521 = vmatpush1.msra.mxu0 0.0
      %522 = vmatprep.subr.mxu0 0.0
      %523 = vmatpush1.msra.mxu0 0.0
      %524 = vmatprep.subr.mxu0 0.0
      %525 = vmatpush1.msra.mxu0 0.0
      %526 = vmatprep.subr.mxu0 0.0
      %527 = vmatpush1.msra.mxu0 0.0
      %528 = vmatprep.subr.mxu0 0.0
      %529 = vmatpush1.msra.mxu0 0.0
      %530 = vmatprep.subr.mxu0 0.0
      %531 = vmatpush1.msra.mxu0 0.0
      %532 = vmatprep.subr.mxu0 0.0
      %533 = vmatpush1.msra.mxu0 0.0
      %534 = vmatprep.subr.mxu0 0.0
      %535 = vmatpush1.msra.mxu0 0.0
      %536 = vmatprep.subr.mxu0 0.0
      %537 = vmatpush1.msra.mxu0 0.0
      %538 = vmatprep.subr.mxu0 0.0
      %539 = vmatpush1.msra.mxu0 0.0
      %540 = vmatprep.subr.mxu0 0.0
      %541 = vmatpush1.msra.mxu0 0.0
      %542 = vmatprep.subr.mxu0 0.0
      %543 = vmatpush1.msra.mxu0 0.0
      %544 = vmatprep.subr.mxu0 0.0
      %545 = vmatpush1.msra.mxu0 0.0
      %546 = vmatprep.subr.mxu0 0.0
      %547 = vmatpush1.msra.mxu0 0.0
      %548 = vmatprep.subr.mxu0 0.0
      %549 = vmatpush1.msra.mxu0 0.0
      %550 = vmatprep.subr.mxu0 0.0
      %551 = vmatpush1.msra.mxu0 0.0
      %552 = vmatprep.subr.mxu0 0.0
      %553 = vmatpush1.msra.mxu0 0.0
      %554 = vmatprep.subr.mxu0 0.0
      %555 = vmatpush1.msra.mxu0 0.0
      %556 = vmatprep.subr.mxu0 0.0
      %557 = vmatpush1.msra.mxu0 0.0
      %558 = vmatprep.subr.mxu0 0.0
      %559 = vmatpush1.msra.mxu0 0.0
      %560 = vmatprep.mubr.f32.mxu0 0.0
      %561 = vmatmul.mubr.f32.gmra.mrb[0].mxu0 %v485
      %v562 = vpop.f32.mrb[0].mxu0
      %v563 = vadd.f32 %v481, %v562
      %v564 = vpop.f32.mrb[0].mxu0
      %565 = vmatprep.mubr.f32.mxu0 0.0
      %566 = vmatmul.mubr.f32.gmra.mrb[0].mxu0 %v488
      %v567 = vpop.f32.mrb[0].mxu0
      %v568 = vadd.f32 %v481, %v567
      %v569 = vpop.f32.mrb[0].mxu0
      %570 = vmatprep.mubr.f32.mxu0 0.0
      %571 = vmatmul.mubr.f32.gmra.mrb[0].mxu0 %v491
      %v572 = vpop.f32.mrb[0].mxu0
      %v573 = vadd.f32 %v481, %v572
      %v574 = vpop.f32.mrb[0].mxu0
      %575 = vmatprep.mubr.f32.mxu0 0.0
      %576 = vmatmul.mubr.f32.gmra.mrb[0].mxu0 %v494
      %v577 = vpop.f32.mrb[0].mxu0
      %v578 = vadd.f32 %v481, %v577
      %v579 = vpop.f32.mrb[0].mxu0
      %580 = vdwg.mxu0
      %v581 = vmax.f32 %v563, 0.0
      %v582 = vmax.f32 %v568, 0.0
      %v583 = vmax.f32 %v573, 0.0
      %v584 = vmax.f32 %v578, 0.0
      %v585 = vld [vmem:[%s3] sm:$0xff]
      %v586 = vld [vmem:[%s3 + $0x8] sm:$0xff]
      %v587 = vld [vmem:[%s3 + $0x10] sm:$0xff]
      %v588 = vld [vmem:[%s3 + $0x18] sm:$0xff]
      %v589 = vld [vmem:[%s3 + $0x20] sm:$0xff]
      %v590 = vld [vmem:[%s3 + $0x28] sm:$0xff]
      %v591 = vld [vmem:[%s3 + $0x30] sm:$0xff]
      %v592 = vld [vmem:[%s3 + $0x38] sm:$0xff]
      %v593 = vld [vmem:[%s3 + $0x40] sm:$0xff]
      %v594 = vld [vmem:[%s3 + $0x48] sm:$0xff]
      %v595 = vld [vmem:[%s3 + $0x50] sm:$0xff]
      %v596 = vld [vmem:[%s3 + $0x58] sm:$0xff]
      %v597 = vld [vmem:[%s3 + $0x60] sm:$0xff]
      %v598 = vld [vmem:[%s3 + $0x68] sm:$0xff]
      %v599 = vld [vmem:[%s3 + $0x70] sm:$0xff]
      %v600 = vld [vmem:[%s3 + $0x78] sm:$0xff]
      %v601 = vld [vmem:[%s4] sm:$0x1]
      %v603 = vlaneseq
      %v604 = vshrl.u32 %v603, 7
      %v605 = vsub.s32 0, %v604
      %v606 = vrot.slane %v601, %v605
      %608 = vmatprep.subr.mxu0 0.0
      %609 = vmatpush1.msra.mxu0 %v585
      %610 = vmatprep.subr.mxu0 0.0
      %611 = vmatpush1.msra.mxu0 %v586
      %612 = vmatprep.subr.mxu0 0.0
      %613 = vmatpush1.msra.mxu0 %v587
      %614 = vmatprep.subr.mxu0 0.0
      %615 = vmatpush1.msra.mxu0 %v588
      %616 = vmatprep.subr.mxu0 0.0
      %617 = vmatpush1.msra.mxu0 %v589
      %618 = vmatprep.subr.mxu0 0.0
      %619 = vmatpush1.msra.mxu0 %v590
      %620 = vmatprep.subr.mxu0 0.0
      %621 = vmatpush1.msra.mxu0 %v591
      %622 = vmatprep.subr.mxu0 0.0
      %623 = vmatpush1.msra.mxu0 %v592
      %624 = vmatprep.subr.mxu0 0.0
      %625 = vmatpush1.msra.mxu0 %v593
      %626 = vmatprep.subr.mxu0 0.0
      %627 = vmatpush1.msra.mxu0 %v594
      %628 = vmatprep.subr.mxu0 0.0
      %629 = vmatpush1.msra.mxu0 %v595
      %630 = vmatprep.subr.mxu0 0.0
      %631 = vmatpush1.msra.mxu0 %v596
      %632 = vmatprep.subr.mxu0 0.0
      %633 = vmatpush1.msra.mxu0 %v597
      %634 = vmatprep.subr.mxu0 0.0
      %635 = vmatpush1.msra.mxu0 %v598
      %636 = vmatprep.subr.mxu0 0.0
      %637 = vmatpush1.msra.mxu0 %v599
      %638 = vmatprep.subr.mxu0 0.0
      %639 = vmatpush1.msra.mxu0 %v600
      %640 = vmatprep.subr.mxu0 0.0
      %641 = vmatpush1.msra.mxu0 0.0
      %642 = vmatprep.subr.mxu0 0.0
      %643 = vmatpush1.msra.mxu0 0.0
      %644 = vmatprep.subr.mxu0 0.0
      %645 = vmatpush1.msra.mxu0 0.0
      %646 = vmatprep.subr.mxu0 0.0
      %647 = vmatpush1.msra.mxu0 0.0
      %648 = vmatprep.subr.mxu0 0.0
      %649 = vmatpush1.msra.mxu0 0.0
      %650 = vmatprep.subr.mxu0 0.0
      %651 = vmatpush1.msra.mxu0 0.0
      %652 = vmatprep.subr.mxu0 0.0
      %653 = vmatpush1.msra.mxu0 0.0
      %654 = vmatprep.subr.mxu0 0.0
      %655 = vmatpush1.msra.mxu0 0.0
      %656 = vmatprep.subr.mxu0 0.0
      %657 = vmatpush1.msra.mxu0 0.0
      %658 = vmatprep.subr.mxu0 0.0
      %659 = vmatpush1.msra.mxu0 0.0
      %660 = vmatprep.subr.mxu0 0.0
      %661 = vmatpush1.msra.mxu0 0.0
      %662 = vmatprep.subr.mxu0 0.0
      %663 = vmatpush1.msra.mxu0 0.0
      %664 = vmatprep.subr.mxu0 0.0
      %665 = vmatpush1.msra.mxu0 0.0
      %666 = vmatprep.subr.mxu0 0.0
      %667 = vmatpush1.msra.mxu0 0.0
      %668 = vmatprep.subr.mxu0 0.0
      %669 = vmatpush1.msra.mxu0 0.0
      %670 = vmatprep.subr.mxu0 0.0
      %671 = vmatpush1.msra.mxu0 0.0
      %672 = vmatprep.mubr.f32.mxu0 0.0
      %673 = vmatmul.mubr.f32.gmra.mrb[0].mxu0 %v581
      %v674 = vpop.f32.mrb[0].mxu0
      %v675 = vadd.f32 %v606, %v674
      %v676 = vpop.f32.mrb[0].mxu0
      %677 = vmatprep.mubr.f32.mxu0 0.0
      %678 = vmatmul.mubr.f32.gmra.mrb[0].mxu0 %v582
      %v679 = vpop.f32.mrb[0].mxu0
      %v680 = vadd.f32 %v606, %v679
      %v681 = vpop.f32.mrb[0].mxu0
      %682 = vmatprep.mubr.f32.mxu0 0.0
      %683 = vmatmul.mubr.f32.gmra.mrb[0].mxu0 %v583
      %v684 = vpop.f32.mrb[0].mxu0
      %v685 = vadd.f32 %v606, %v684
      %v686 = vpop.f32.mrb[0].mxu0
      %687 = vmatprep.mubr.f32.mxu0 0.0
      %688 = vmatmul.mubr.f32.gmra.mrb[0].mxu0 %v584
      %v689 = vpop.f32.mrb[0].mxu0
      %v690 = vadd.f32 %v606, %v689
      %v691 = vpop.f32.mrb[0].mxu0
      %692 = vdwg.mxu0
      %v693 = vmax.f32 %v675, 0.0
      %v694 = vmax.f32 %v680, 0.0
      %v695 = vmax.f32 %v685, 0.0
      %v696 = vmax.f32 %v690, 0.0
      %v697 = vld [vmem:[%s5] sm:$0xff]
      %v698 = vld [vmem:[%s5 + $0x8] sm:$0xff]
      %v699 = vld [vmem:[%s5 + $0x10] sm:$0xff]
      %v700 = vld [vmem:[%s5 + $0x18] sm:$0xff]
      %v701 = vld [vmem:[%s5 + $0x20] sm:$0xff]
      %v702 = vld [vmem:[%s5 + $0x28] sm:$0xff]
      %v703 = vld [vmem:[%s5 + $0x30] sm:$0xff]
      %v704 = vld [vmem:[%s5 + $0x38] sm:$0xff]
      %v705 = vld [vmem:[%s6] sm:$0x1]
      %v707 = vlaneseq
      %v708 = vshrl.u32 %v707, 7
      %v709 = vsub.s32 0, %v708
      %v710 = vrot.slane %v705, %v709
      %vm712 = vcmask 523264
      %v714 = vsel %vm712, %v693, 0
      %v717 = vsel %vm712, %v694, 0
      %v720 = vsel %vm712, %v695, 0
      %v723 = vsel %vm712, %v696, 0
      %725 = vmatprep.subr.mxu0 0.0
      %726 = vmatpush1.msra.mxu0 %v697
      %727 = vmatprep.subr.mxu0 0.0
      %728 = vmatpush1.msra.mxu0 %v698
      %729 = vmatprep.subr.mxu0 0.0
      %730 = vmatpush1.msra.mxu0 %v699
      %731 = vmatprep.subr.mxu0 0.0
      %732 = vmatpush1.msra.mxu0 %v700
      %733 = vmatprep.subr.mxu0 0.0
      %734 = vmatpush1.msra.mxu0 %v701
      %735 = vmatprep.subr.mxu0 0.0
      %736 = vmatpush1.msra.mxu0 %v702
      %737 = vmatprep.subr.mxu0 0.0
      %738 = vmatpush1.msra.mxu0 %v703
      %739 = vmatprep.subr.mxu0 0.0
      %740 = vmatpush1.msra.mxu0 %v704
      %741 = vmatprep.subr.mxu0 0.0
      %742 = vmatpush1.msra.mxu0 0.0
      %743 = vmatprep.subr.mxu0 0.0
      %744 = vmatpush1.msra.mxu0 0.0
      %745 = vmatprep.subr.mxu0 0.0
      %746 = vmatpush1.msra.mxu0 0.0
      %747 = vmatprep.subr.mxu0 0.0
      %748 = vmatpush1.msra.mxu0 0.0
      %749 = vmatprep.subr.mxu0 0.0
      %750 = vmatpush1.msra.mxu0 0.0
      %751 = vmatprep.subr.mxu0 0.0
      %752 = vmatpush1.msra.mxu0 0.0
      %753 = vmatprep.subr.mxu0 0.0
      %754 = vmatpush1.msra.mxu0 0.0
      %755 = vmatprep.subr.mxu0 0.0
      %756 = vmatpush1.msra.mxu0 0.0
      %757 = vmatprep.subr.mxu0 0.0
      %758 = vmatpush1.msra.mxu0 0.0
      %759 = vmatprep.subr.mxu0 0.0
      %760 = vmatpush1.msra.mxu0 0.0
      %761 = vmatprep.subr.mxu0 0.0
      %762 = vmatpush1.msra.mxu0 0.0
      %763 = vmatprep.subr.mxu0 0.0
      %764 = vmatpush1.msra.mxu0 0.0
      %765 = vmatprep.subr.mxu0 0.0
      %766 = vmatpush1.msra.mxu0 0.0
      %767 = vmatprep.subr.mxu0 0.0
      %768 = vmatpush1.msra.mxu0 0.0
      %769 = vmatprep.subr.mxu0 0.0
      %770 = vmatpush1.msra.mxu0 0.0
      %771 = vmatprep.subr.mxu0 0.0
      %772 = vmatpush1.msra.mxu0 0.0
      %773 = vmatprep.subr.mxu0 0.0
      %774 = vmatpush1.msra.mxu0 0.0
      %775 = vmatprep.subr.mxu0 0.0
      %776 = vmatpush1.msra.mxu0 0.0
      %777 = vmatprep.subr.mxu0 0.0
      %778 = vmatpush1.msra.mxu0 0.0
      %779 = vmatprep.subr.mxu0 0.0
      %780 = vmatpush1.msra.mxu0 0.0
      %781 = vmatprep.subr.mxu0 0.0
      %782 = vmatpush1.msra.mxu0 0.0
      %783 = vmatprep.subr.mxu0 0.0
      %784 = vmatpush1.msra.mxu0 0.0
      %785 = vmatprep.subr.mxu0 0.0
      %786 = vmatpush1.msra.mxu0 0.0
      %787 = vmatprep.subr.mxu0 0.0
      %788 = vmatpush1.msra.mxu0 0.0
      %789 = vmatprep.mubr.f32.mxu0 0.0
      %790 = vmatmul.mubr.f32.gmra.mrb[0].mxu0 %v714
      %v791 = vpop.f32.mrb[0].mxu0
      %v792 = vadd.f32 %v710, %v791
      %v793 = vpop.f32.mrb[0].mxu0
      %794 = vmatprep.mubr.f32.mxu0 0.0
      %795 = vmatmul.mubr.f32.gmra.mrb[0].mxu0 %v717
      %v796 = vpop.f32.mrb[0].mxu0
      %v797 = vadd.f32 %v710, %v796
      %v798 = vpop.f32.mrb[0].mxu0
      %799 = vmatprep.mubr.f32.mxu0 0.0
      %800 = vmatmul.mubr.f32.gmra.mrb[0].mxu0 %v720
      %v801 = vpop.f32.mrb[0].mxu0
      %v802 = vadd.f32 %v710, %v801
      %v803 = vpop.f32.mrb[0].mxu0
      %804 = vmatprep.mubr.f32.mxu0 0.0
      %805 = vmatmul.mubr.f32.gmra.mrb[0].mxu0 %v723
      %v806 = vpop.f32.mrb[0].mxu0
      %v807 = vadd.f32 %v710, %v806
      %v808 = vpop.f32.mrb[0].mxu0
      %809 = vdwg.mxu0
      %v810 = vmul.f32 %v792, 0.5
      %v811 = vmul.f32 %v797, 0.5
      %v812 = vmul.f32 %v802, 0.5
      %v813 = vmul.f32 %v807, 0.5
      %v814 = vmul.f32 %v810, 1.442695
      %v815 = vpow.pop %v814
      %v816 = vmul.f32 %v811, 1.442695
      %v817 = vpow.pop %v816
      %v818 = vmul.f32 %v812, 1.442695
      %v819 = vpow.pop %v818
      %v820 = vmul.f32 %v813, 1.442695
      %v821 = vpow.pop %v820
      %826 = vrot.lane.b32.xlu0 %v815, 6
      %v827 = vpop.permute.xlu0 %826
      %828 = vrot.lane.b32.xlu0 %v817, 6
      %v829 = vpop.permute.xlu0 %828
      %830 = vrot.lane.b32.xlu0 %v819, 6
      %v831 = vpop.permute.xlu0 %830
      %832 = vrot.lane.b32.xlu0 %v821, 6
      %v833 = vpop.permute.xlu0 %832
      %v838 = vmul.f32 %v471, %v827
      %v839 = vmul.f32 %v472, %v829
      %v840 = vmul.f32 %v473, %v831
      %v841 = vmul.f32 %v474, %v833
      %846 = vrot.lane.b32.xlu0 %v838, 120
      %v847 = vpop.permute.xlu0 %846
      %848 = vrot.lane.b32.xlu0 %v839, 120
      %v849 = vpop.permute.xlu0 %848
      %850 = vrot.lane.b32.xlu0 %v840, 120
      %v851 = vpop.permute.xlu0 %850
      %852 = vrot.lane.b32.xlu0 %v841, 120
      %v853 = vpop.permute.xlu0 %852
      %v858 = vadd.f32 %v792, %v847
      %v859 = vadd.f32 %v797, %v849
      %v860 = vadd.f32 %v802, %v851
      %v861 = vadd.f32 %v807, %v853
      %v862 = vld [vmem:[%s7] sm:$0x3]
      %v863 = vld [vmem:[%s8] sm:$0xf]
      %vm864 = vcmask 31744
      %v865 = vsel %vm864, %v471, 0
      %v867 = vsel %vm864, %v472, 0
      %v869 = vsel %vm864, %v473, 0
      %v871 = vsel %vm864, %v474, 0
      %vm873 = vcmask 1043456
      %v875 = vsel %vm873, %v863, 0
      %877 = vmatprep.subr.mxu0 0.0
      %878 = vmatpush1.msra.mxu0 %v875
      %879 = vmatprep.subr.mxu0 0.0
      %880 = vmatpush1.msra.mxu0 0.0
      %881 = vmatprep.subr.mxu0 0.0
      %882 = vmatpush1.msra.mxu0 0.0
      %883 = vmatprep.subr.mxu0 0.0
      %884 = vmatpush1.msra.mxu0 0.0
      %885 = vmatprep.subr.mxu0 0.0
      %886 = vmatpush1.msra.mxu0 0.0
      %887 = vmatprep.subr.mxu0 0.0
      %888 = vmatpush1.msra.mxu0 0.0
      %889 = vmatprep.subr.mxu0 0.0
      %890 = vmatpush1.msra.mxu0 0.0
      %891 = vmatprep.subr.mxu0 0.0
      %892 = vmatpush1.msra.mxu0 0.0
      %893 = vmatprep.subr.mxu0 0.0
      %894 = vmatpush1.msra.mxu0 0.0
      %895 = vmatprep.subr.mxu0 0.0
      %896 = vmatpush1.msra.mxu0 0.0
      %897 = vmatprep.subr.mxu0 0.0
      %898 = vmatpush1.msra.mxu0 0.0
      %899 = vmatprep.subr.mxu0 0.0
      %900 = vmatpush1.msra.mxu0 0.0
      %901 = vmatprep.subr.mxu0 0.0
      %902 = vmatpush1.msra.mxu0 0.0
      %903 = vmatprep.subr.mxu0 0.0
      %904 = vmatpush1.msra.mxu0 0.0
      %905 = vmatprep.subr.mxu0 0.0
      %906 = vmatpush1.msra.mxu0 0.0
      %907 = vmatprep.subr.mxu0 0.0
      %908 = vmatpush1.msra.mxu0 0.0
      %909 = vmatprep.subr.mxu0 0.0
      %910 = vmatpush1.msra.mxu0 0.0
      %911 = vmatprep.subr.mxu0 0.0
      %912 = vmatpush1.msra.mxu0 0.0
      %913 = vmatprep.subr.mxu0 0.0
      %914 = vmatpush1.msra.mxu0 0.0
      %915 = vmatprep.subr.mxu0 0.0
      %916 = vmatpush1.msra.mxu0 0.0
      %917 = vmatprep.subr.mxu0 0.0
      %918 = vmatpush1.msra.mxu0 0.0
      %919 = vmatprep.subr.mxu0 0.0
      %920 = vmatpush1.msra.mxu0 0.0
      %921 = vmatprep.subr.mxu0 0.0
      %922 = vmatpush1.msra.mxu0 0.0
      %923 = vmatprep.subr.mxu0 0.0
      %924 = vmatpush1.msra.mxu0 0.0
      %925 = vmatprep.subr.mxu0 0.0
      %926 = vmatpush1.msra.mxu0 0.0
      %927 = vmatprep.subr.mxu0 0.0
      %928 = vmatpush1.msra.mxu0 0.0
      %929 = vmatprep.subr.mxu0 0.0
      %930 = vmatpush1.msra.mxu0 0.0
      %931 = vmatprep.subr.mxu0 0.0
      %932 = vmatpush1.msra.mxu0 0.0
      %933 = vmatprep.subr.mxu0 0.0
      %934 = vmatpush1.msra.mxu0 0.0
      %935 = vmatprep.subr.mxu0 0.0
      %936 = vmatpush1.msra.mxu0 0.0
      %937 = vmatprep.subr.mxu0 0.0
      %938 = vmatpush1.msra.mxu0 0.0
      %939 = vmatprep.subr.mxu0 0.0
      %940 = vmatpush1.msra.mxu0 0.0
      %941 = vmatprep.mubr.f32.mxu0 0.0
      %942 = vmatmul.mubr.f32.gmra.mrb[0].mxu0 %v865
      %v943 = vpop.f32.mrb[0].mxu0
      %v944 = vadd.f32 0.0, %v943
      %v945 = vpop.f32.mrb[0].mxu0
      %946 = vmatprep.mubr.f32.mxu0 0.0
      %947 = vmatmul.mubr.f32.gmra.mrb[0].mxu0 %v867
      %v948 = vpop.f32.mrb[0].mxu0
      %v949 = vadd.f32 0.0, %v948
      %v950 = vpop.f32.mrb[0].mxu0
      %951 = vmatprep.mubr.f32.mxu0 0.0
      %952 = vmatmul.mubr.f32.gmra.mrb[0].mxu0 %v869
      %v953 = vpop.f32.mrb[0].mxu0
      %v954 = vadd.f32 0.0, %v953
      %v955 = vpop.f32.mrb[0].mxu0
      %956 = vmatprep.mubr.f32.mxu0 0.0
      %957 = vmatmul.mubr.f32.gmra.mrb[0].mxu0 %v871
      %v958 = vpop.f32.mrb[0].mxu0
      %v959 = vadd.f32 0.0, %v958
      %v960 = vpop.f32.mrb[0].mxu0
      %961 = vdwg.mxu0
      %vm962 = vcmask 15360
      %v964 = vsel %vm962, %v858, 0
      %v967 = vsel %vm962, %v859, 0
      %v970 = vsel %vm962, %v860, 0
      %v973 = vsel %vm962, %v861, 0
      %vm975 = vcmask 1041408
      %v977 = vsel %vm975, %v862, 0
      %979 = vmatprep.subr.mxu0 0.0
      %980 = vmatpush1.msra.mxu0 %v977
      %981 = vmatprep.subr.mxu0 0.0
      %982 = vmatpush1.msra.mxu0 0.0
      %983 = vmatprep.subr.mxu0 0.0
      %984 = vmatpush1.msra.mxu0 0.0
      %985 = vmatprep.subr.mxu0 0.0
      %986 = vmatpush1.msra.mxu0 0.0
      %987 = vmatprep.subr.mxu0 0.0
      %988 = vmatpush1.msra.mxu0 0.0
      %989 = vmatprep.subr.mxu0 0.0
      %990 = vmatpush1.msra.mxu0 0.0
      %991 = vmatprep.subr.mxu0 0.0
      %992 = vmatpush1.msra.mxu0 0.0
      %993 = vmatprep.subr.mxu0 0.0
      %994 = vmatpush1.msra.mxu0 0.0
      %995 = vmatprep.subr.mxu0 0.0
      %996 = vmatpush1.msra.mxu0 0.0
      %997 = vmatprep.subr.mxu0 0.0
      %998 = vmatpush1.msra.mxu0 0.0
      %999 = vmatprep.subr.mxu0 0.0
      %1000 = vmatpush1.msra.mxu0 0.0
      %1001 = vmatprep.subr.mxu0 0.0
      %1002 = vmatpush1.msra.mxu0 0.0
      %1003 = vmatprep.subr.mxu0 0.0
      %1004 = vmatpush1.msra.mxu0 0.0
      %1005 = vmatprep.subr.mxu0 0.0
      %1006 = vmatpush1.msra.mxu0 0.0
      %1007 = vmatprep.subr.mxu0 0.0
      %1008 = vmatpush1.msra.mxu0 0.0
      %1009 = vmatprep.subr.mxu0 0.0
      %1010 = vmatpush1.msra.mxu0 0.0
      %1011 = vmatprep.subr.mxu0 0.0
      %1012 = vmatpush1.msra.mxu0 0.0
      %1013 = vmatprep.subr.mxu0 0.0
      %1014 = vmatpush1.msra.mxu0 0.0
      %1015 = vmatprep.subr.mxu0 0.0
      %1016 = vmatpush1.msra.mxu0 0.0
      %1017 = vmatprep.subr.mxu0 0.0
      %1018 = vmatpush1.msra.mxu0 0.0
      %1019 = vmatprep.subr.mxu0 0.0
      %1020 = vmatpush1.msra.mxu0 0.0
      %1021 = vmatprep.subr.mxu0 0.0
      %1022 = vmatpush1.msra.mxu0 0.0
      %1023 = vmatprep.subr.mxu0 0.0
      %1024 = vmatpush1.msra.mxu0 0.0
      %1025 = vmatprep.subr.mxu0 0.0
      %1026 = vmatpush1.msra.mxu0 0.0
      %1027 = vmatprep.subr.mxu0 0.0
      %1028 = vmatpush1.msra.mxu0 0.0
      %1029 = vmatprep.subr.mxu0 0.0
      %1030 = vmatpush1.msra.mxu0 0.0
      %1031 = vmatprep.subr.mxu0 0.0
      %1032 = vmatpush1.msra.mxu0 0.0
      %1033 = vmatprep.subr.mxu0 0.0
      %1034 = vmatpush1.msra.mxu0 0.0
      %1035 = vmatprep.subr.mxu0 0.0
      %1036 = vmatpush1.msra.mxu0 0.0
      %1037 = vmatprep.subr.mxu0 0.0
      %1038 = vmatpush1.msra.mxu0 0.0
      %1039 = vmatprep.subr.mxu0 0.0
      %1040 = vmatpush1.msra.mxu0 0.0
      %1041 = vmatprep.subr.mxu0 0.0
      %1042 = vmatpush1.msra.mxu0 0.0
      %1043 = vmatprep.mubr.f32.mxu0 0.0
      %1044 = vmatmul.mubr.f32.gmra.mrb[0].mxu0 %v964
      %v1045 = vpop.f32.mrb[0].mxu0
      %v1046 = vadd.f32 %v944, %v1045
      %v1047 = vpop.f32.mrb[0].mxu0
      %1048 = vmatprep.mubr.f32.mxu0 0.0
      %1049 = vmatmul.mubr.f32.gmra.mrb[0].mxu0 %v967
      %v1050 = vpop.f32.mrb[0].mxu0
      %v1051 = vadd.f32 %v949, %v1050
      %v1052 = vpop.f32.mrb[0].mxu0
      %1053 = vmatprep.mubr.f32.mxu0 0.0
      %1054 = vmatmul.mubr.f32.gmra.mrb[0].mxu0 %v970
      %v1055 = vpop.f32.mrb[0].mxu0
      %v1056 = vadd.f32 %v954, %v1055
      %v1057 = vpop.f32.mrb[0].mxu0
      %1058 = vmatprep.mubr.f32.mxu0 0.0
      %1059 = vmatmul.mubr.f32.gmra.mrb[0].mxu0 %v973
      %v1060 = vpop.f32.mrb[0].mxu0
      %v1061 = vadd.f32 %v959, %v1060
      %v1062 = vpop.f32.mrb[0].mxu0
      %1063 = vdwg.mxu0
      %v1064 = vld [vmem:[%s9] sm:$0x1]
      %v1066 = vlaneseq
      %v1067 = vshrl.u32 %v1066, 7
      %v1068 = vsub.s32 0, %v1067
      %v1069 = vrot.slane %v1064, %v1068
      %v1071 = vadd.f32 %v1046, %v1069
      %v1072 = vadd.f32 %v1051, %v1069
      %v1073 = vadd.f32 %v1056, %v1069
      %v1074 = vadd.f32 %v1061, %v1069
      %v1075 = vmax.f32 %v1071, 0.0
      %v1076 = vmax.f32 %v1072, 0.0
      %v1077 = vmax.f32 %v1073, 0.0
      %v1078 = vmax.f32 %v1074, 0.0
      %v1079 = vld [vmem:[%s10] sm:$0xff]
      %v1080 = vld [vmem:[%s10 + $0x8] sm:$0xff]
      %v1081 = vld [vmem:[%s10 + $0x10] sm:$0xff]
      %v1082 = vld [vmem:[%s10 + $0x18] sm:$0xff]
      %v1083 = vld [vmem:[%s10 + $0x20] sm:$0xff]
      %v1084 = vld [vmem:[%s10 + $0x28] sm:$0xff]
      %v1085 = vld [vmem:[%s10 + $0x30] sm:$0xff]
      %v1086 = vld [vmem:[%s10 + $0x38] sm:$0xff]
      %v1087 = vld [vmem:[%s11] sm:$0x1]
      %v1089 = vlaneseq
      %v1090 = vshrl.u32 %v1089, 7
      %v1091 = vsub.s32 0, %v1090
      %v1092 = vrot.slane %v1087, %v1091
      %v1095 = vsel %vm712, %v1075, 0
      %v1098 = vsel %vm712, %v1076, 0
      %v1101 = vsel %vm712, %v1077, 0
      %v1104 = vsel %vm712, %v1078, 0
      %1106 = vmatprep.subr.mxu0 0.0
      %1107 = vmatpush1.msra.mxu0 %v1079
      %1108 = vmatprep.subr.mxu0 0.0
      %1109 = vmatpush1.msra.mxu0 %v1080
      %1110 = vmatprep.subr.mxu0 0.0
      %1111 = vmatpush1.msra.mxu0 %v1081
      %1112 = vmatprep.subr.mxu0 0.0
      %1113 = vmatpush1.msra.mxu0 %v1082
      %1114 = vmatprep.subr.mxu0 0.0
      %1115 = vmatpush1.msra.mxu0 %v1083
      %1116 = vmatprep.subr.mxu0 0.0
      %1117 = vmatpush1.msra.mxu0 %v1084
      %1118 = vmatprep.subr.mxu0 0.0
      %1119 = vmatpush1.msra.mxu0 %v1085
      %1120 = vmatprep.subr.mxu0 0.0
      %1121 = vmatpush1.msra.mxu0 %v1086
      %1122 = vmatprep.subr.mxu0 0.0
      %1123 = vmatpush1.msra.mxu0 0.0
      %1124 = vmatprep.subr.mxu0 0.0
      %1125 = vmatpush1.msra.mxu0 0.0
      %1126 = vmatprep.subr.mxu0 0.0
      %1127 = vmatpush1.msra.mxu0 0.0
      %1128 = vmatprep.subr.mxu0 0.0
      %1129 = vmatpush1.msra.mxu0 0.0
      %1130 = vmatprep.subr.mxu0 0.0
      %1131 = vmatpush1.msra.mxu0 0.0
      %1132 = vmatprep.subr.mxu0 0.0
      %1133 = vmatpush1.msra.mxu0 0.0
      %1134 = vmatprep.subr.mxu0 0.0
      %1135 = vmatpush1.msra.mxu0 0.0
      %1136 = vmatprep.subr.mxu0 0.0
      %1137 = vmatpush1.msra.mxu0 0.0
      %1138 = vmatprep.subr.mxu0 0.0
      %1139 = vmatpush1.msra.mxu0 0.0
      %1140 = vmatprep.subr.mxu0 0.0
      %1141 = vmatpush1.msra.mxu0 0.0
      %1142 = vmatprep.subr.mxu0 0.0
      %1143 = vmatpush1.msra.mxu0 0.0
      %1144 = vmatprep.subr.mxu0 0.0
      %1145 = vmatpush1.msra.mxu0 0.0
      %1146 = vmatprep.subr.mxu0 0.0
      %1147 = vmatpush1.msra.mxu0 0.0
      %1148 = vmatprep.subr.mxu0 0.0
      %1149 = vmatpush1.msra.mxu0 0.0
      %1150 = vmatprep.subr.mxu0 0.0
      %1151 = vmatpush1.msra.mxu0 0.0
      %1152 = vmatprep.subr.mxu0 0.0
      %1153 = vmatpush1.msra.mxu0 0.0
      %1154 = vmatprep.subr.mxu0 0.0
      %1155 = vmatpush1.msra.mxu0 0.0
      %1156 = vmatprep.subr.mxu0 0.0
      %1157 = vmatpush1.msra.mxu0 0.0
      %1158 = vmatprep.subr.mxu0 0.0
      %1159 = vmatpush1.msra.mxu0 0.0
      %1160 = vmatprep.subr.mxu0 0.0
      %1161 = vmatpush1.msra.mxu0 0.0
      %1162 = vmatprep.subr.mxu0 0.0
      %1163 = vmatpush1.msra.mxu0 0.0
      %1164 = vmatprep.subr.mxu0 0.0
      %1165 = vmatpush1.msra.mxu0 0.0
      %1166 = vmatprep.subr.mxu0 0.0
      %1167 = vmatpush1.msra.mxu0 0.0
      %1168 = vmatprep.subr.mxu0 0.0
      %1169 = vmatpush1.msra.mxu0 0.0
      %1170 = vmatprep.mubr.f32.mxu0 0.0
      %1171 = vmatmul.mubr.f32.gmra.mrb[0].mxu0 %v1095
      %v1172 = vpop.f32.mrb[0].mxu0
      %v1173 = vadd.f32 %v1092, %v1172
      %v1174 = vpop.f32.mrb[0].mxu0
      %1175 = vmatprep.mubr.f32.mxu0 0.0
      %1176 = vmatmul.mubr.f32.gmra.mrb[0].mxu0 %v1098
      %v1177 = vpop.f32.mrb[0].mxu0
      %v1178 = vadd.f32 %v1092, %v1177
      %v1179 = vpop.f32.mrb[0].mxu0
      %1180 = vmatprep.mubr.f32.mxu0 0.0
      %1181 = vmatmul.mubr.f32.gmra.mrb[0].mxu0 %v1101
      %v1182 = vpop.f32.mrb[0].mxu0
      %v1183 = vadd.f32 %v1092, %v1182
      %v1184 = vpop.f32.mrb[0].mxu0
      %1185 = vmatprep.mubr.f32.mxu0 0.0
      %1186 = vmatmul.mubr.f32.gmra.mrb[0].mxu0 %v1104
      %v1187 = vpop.f32.mrb[0].mxu0
      %v1188 = vadd.f32 %v1092, %v1187
      %v1189 = vpop.f32.mrb[0].mxu0
      %1190 = vdwg.mxu0
      %v1191 = vmax.f32 %v1173, 0.0
      %v1192 = vmax.f32 %v1178, 0.0
      %v1193 = vmax.f32 %v1183, 0.0
      %v1194 = vmax.f32 %v1188, 0.0
      %v1195 = vld [vmem:[%s12] sm:$0xff]
      %v1196 = vld [vmem:[%s12 + $0x8] sm:$0xff]
      %v1197 = vld [vmem:[%s12 + $0x10] sm:$0xff]
      %v1198 = vld [vmem:[%s12 + $0x18] sm:$0xff]
      %v1199 = vld [vmem:[%s12 + $0x20] sm:$0xff]
      %v1200 = vld [vmem:[%s12 + $0x28] sm:$0xff]
      %v1201 = vld [vmem:[%s12 + $0x30] sm:$0xff]
      %v1202 = vld [vmem:[%s12 + $0x38] sm:$0xff]
      %v1203 = vld [vmem:[%s12 + $0x40] sm:$0xff]
      %v1204 = vld [vmem:[%s12 + $0x48] sm:$0xff]
      %v1205 = vld [vmem:[%s12 + $0x50] sm:$0xff]
      %v1206 = vld [vmem:[%s12 + $0x58] sm:$0xff]
      %v1207 = vld [vmem:[%s12 + $0x60] sm:$0xff]
      %v1208 = vld [vmem:[%s12 + $0x68] sm:$0xff]
      %v1209 = vld [vmem:[%s12 + $0x70] sm:$0xff]
      %v1210 = vld [vmem:[%s12 + $0x78] sm:$0xff]
      %v1211 = vld [vmem:[%s13] sm:$0x1]
      %v1213 = vlaneseq
      %v1214 = vshrl.u32 %v1213, 7
      %v1215 = vsub.s32 0, %v1214
      %v1216 = vrot.slane %v1211, %v1215
      %1218 = vmatprep.subr.mxu0 0.0
      %1219 = vmatpush1.msra.mxu0 %v1195
      %1220 = vmatprep.subr.mxu0 0.0
      %1221 = vmatpush1.msra.mxu0 %v1196
      %1222 = vmatprep.subr.mxu0 0.0
      %1223 = vmatpush1.msra.mxu0 %v1197
      %1224 = vmatprep.subr.mxu0 0.0
      %1225 = vmatpush1.msra.mxu0 %v1198
      %1226 = vmatprep.subr.mxu0 0.0
      %1227 = vmatpush1.msra.mxu0 %v1199
      %1228 = vmatprep.subr.mxu0 0.0
      %1229 = vmatpush1.msra.mxu0 %v1200
      %1230 = vmatprep.subr.mxu0 0.0
      %1231 = vmatpush1.msra.mxu0 %v1201
      %1232 = vmatprep.subr.mxu0 0.0
      %1233 = vmatpush1.msra.mxu0 %v1202
      %1234 = vmatprep.subr.mxu0 0.0
      %1235 = vmatpush1.msra.mxu0 %v1203
      %1236 = vmatprep.subr.mxu0 0.0
      %1237 = vmatpush1.msra.mxu0 %v1204
      %1238 = vmatprep.subr.mxu0 0.0
      %1239 = vmatpush1.msra.mxu0 %v1205
      %1240 = vmatprep.subr.mxu0 0.0
      %1241 = vmatpush1.msra.mxu0 %v1206
      %1242 = vmatprep.subr.mxu0 0.0
      %1243 = vmatpush1.msra.mxu0 %v1207
      %1244 = vmatprep.subr.mxu0 0.0
      %1245 = vmatpush1.msra.mxu0 %v1208
      %1246 = vmatprep.subr.mxu0 0.0
      %1247 = vmatpush1.msra.mxu0 %v1209
      %1248 = vmatprep.subr.mxu0 0.0
      %1249 = vmatpush1.msra.mxu0 %v1210
      %1250 = vmatprep.subr.mxu0 0.0
      %1251 = vmatpush1.msra.mxu0 0.0
      %1252 = vmatprep.subr.mxu0 0.0
      %1253 = vmatpush1.msra.mxu0 0.0
      %1254 = vmatprep.subr.mxu0 0.0
      %1255 = vmatpush1.msra.mxu0 0.0
      %1256 = vmatprep.subr.mxu0 0.0
      %1257 = vmatpush1.msra.mxu0 0.0
      %1258 = vmatprep.subr.mxu0 0.0
      %1259 = vmatpush1.msra.mxu0 0.0
      %1260 = vmatprep.subr.mxu0 0.0
      %1261 = vmatpush1.msra.mxu0 0.0
      %1262 = vmatprep.subr.mxu0 0.0
      %1263 = vmatpush1.msra.mxu0 0.0
      %1264 = vmatprep.subr.mxu0 0.0
      %1265 = vmatpush1.msra.mxu0 0.0
      %1266 = vmatprep.subr.mxu0 0.0
      %1267 = vmatpush1.msra.mxu0 0.0
      %1268 = vmatprep.subr.mxu0 0.0
      %1269 = vmatpush1.msra.mxu0 0.0
      %1270 = vmatprep.subr.mxu0 0.0
      %1271 = vmatpush1.msra.mxu0 0.0
      %1272 = vmatprep.subr.mxu0 0.0
      %1273 = vmatpush1.msra.mxu0 0.0
      %1274 = vmatprep.subr.mxu0 0.0
      %1275 = vmatpush1.msra.mxu0 0.0
      %1276 = vmatprep.subr.mxu0 0.0
      %1277 = vmatpush1.msra.mxu0 0.0
      %1278 = vmatprep.subr.mxu0 0.0
      %1279 = vmatpush1.msra.mxu0 0.0
      %1280 = vmatprep.subr.mxu0 0.0
      %1281 = vmatpush1.msra.mxu0 0.0
      %1282 = vmatprep.mubr.f32.mxu0 0.0
      %1283 = vmatmul.mubr.f32.gmra.mrb[0].mxu0 %v1191
      %v1284 = vpop.f32.mrb[0].mxu0
      %v1285 = vadd.f32 %v1216, %v1284
      %v1286 = vpop.f32.mrb[0].mxu0
      %1287 = vmatprep.mubr.f32.mxu0 0.0
      %1288 = vmatmul.mubr.f32.gmra.mrb[0].mxu0 %v1192
      %v1289 = vpop.f32.mrb[0].mxu0
      %v1290 = vadd.f32 %v1216, %v1289
      %v1291 = vpop.f32.mrb[0].mxu0
      %1292 = vmatprep.mubr.f32.mxu0 0.0
      %1293 = vmatmul.mubr.f32.gmra.mrb[0].mxu0 %v1193
      %v1294 = vpop.f32.mrb[0].mxu0
      %v1295 = vadd.f32 %v1216, %v1294
      %v1296 = vpop.f32.mrb[0].mxu0
      %1297 = vmatprep.mubr.f32.mxu0 0.0
      %1298 = vmatmul.mubr.f32.gmra.mrb[0].mxu0 %v1194
      %v1299 = vpop.f32.mrb[0].mxu0
      %v1300 = vadd.f32 %v1216, %v1299
      %v1301 = vpop.f32.mrb[0].mxu0
      %1302 = vdwg.mxu0
      %1307 = vrot.lane.b32.xlu0 %v792, 4
      %v1308 = vpop.permute.xlu0 %1307
      %1309 = vrot.lane.b32.xlu0 %v797, 4
      %v1310 = vpop.permute.xlu0 %1309
      %1311 = vrot.lane.b32.xlu0 %v802, 4
      %v1312 = vpop.permute.xlu0 %1311
      %1313 = vrot.lane.b32.xlu0 %v807, 4
      %v1314 = vpop.permute.xlu0 %1313
      %v1319 = vsel %vm864, %v1285, %v1308
      %v1320 = vsel %vm864, %v1290, %v1310
      %v1321 = vsel %vm864, %v1295, %v1312
      %v1322 = vsel %vm864, %v1300, %v1314
      %1323 = vst.msk [vmem:[%s469] sm:$0xff] %vm483, %v1319
      %1324 = vst.msk [vmem:[%s469 + $0x8] sm:$0xff] %vm483, %v1320
      %1325 = vst.msk [vmem:[%s469 + $0x10] sm:$0xff] %vm483, %v1321
      %1326 = vst.msk [vmem:[%s469 + $0x18] sm:$0xff] %vm483, %v1322
      %s1327 = smul.u32 4, %s25
      %p1328 = scmp.lt.s32.totalorder %s1327, 7
      %s1329 = scalar_select %p1328, %s1327, 7
      %s1330 = smul.addr %s1329, 8
      %s1331 = scalar_lea.vmem %s14, %s1330
      // Predicated region
      $region77: #{cvae_forward.1} parent=75 // pred_check
        %p1332 = pneg %p342
      $region78: #{cvae_forward.1} parent=75 // pred_check_branch
        %1334 = sbr.rel (%p1332) target = $region80
      $region79: #{cvae_forward.1} parent=75 // pred_region
        %s1335 = smul.u32 4, %s25
      $region80: #{cvae_forward.1} parent=75 // pred_fallthru
        _
    $region76: #{cvae_forward.1} parent=5 // pred_fallthru
      _
    %p1336 = scmp.le.s32.totalorder 2, %s20
    // Predicated region
    $region81: #{cvae_forward.1} parent=5 // pred_check
      %p1337 = pneg %p1336
    $region82: #{cvae_forward.1} parent=5 // pred_check_branch
      %1339 = sbr.rel (%p1337) target = $region84
    $region83: #{cvae_forward.1} parent=5 // pred_region
      %s1340 = ssub.s32 %s20, 2
      // Predicated region
      $region85: #{cvae_forward.1} parent=83 // pred_check
        %p1341 = pneg %p348
      $region86: #{cvae_forward.1} parent=83 // pred_check_branch
        %1343 = sbr.rel (%p1341) target = $region88
      $region87: #{cvae_forward.1} parent=83 // pred_region
        %s1344 = smul.u32 4, %s26
        %p1345 = scmp.lt.s32.totalorder %s1344, 7
        %s1346 = scalar_select %p1345, %s1344, 7
        %s1347 = smul.addr %s1346, 8
        %s1348 = scalar_lea.vmem %s14, %s1347
      $region88: #{cvae_forward.1} parent=83 // pred_fallthru
        _
    $region84: #{cvae_forward.1} parent=5 // pred_fallthru
      _
  $region6: #{cvae_forward.1} parent=0 // loop_footer
    %s24 = sadd.s32 1, %s20
  $region7: #{cvae_forward.1} parent=0 // loop_footer_branch
    %19 = sbr.rel target = $region3
  $region8: #{cvae_forward.1} parent=0 // loop_exit
    _

</llo_original>
